<compile_context>
chip_gen: v6e
topology: v6e:2x2x1
jax: 0.10.0
libtpu: 0.0.40
codegen_flags: <defaults>
</compile_context>

<pallas_src>
import jax
import jax.numpy as jnp
from jax.experimental import pallas as pl
from jax.experimental.pallas import tpu as pltpu


def mlp_kernel(x_ref, w1_ref, b1_ref, w2_ref, b2_ref, o_ref):
    # Linear1 on the MXU: bf16 operands, f32 accumulation.
    h = jnp.dot(x_ref[...], w1_ref[...], preferred_element_type=jnp.float32)
    h = h + b1_ref[...]            # (tb, H) + (1, H) broadcast, f32 on the VPU
    h = jnp.tanh(h)                # f32 tanh on the EUP (v5e has no bf16 EUP)
    # Linear2: cast the activation back to the weight dtype for the MXU.
    y = jnp.dot(h.astype(w2_ref.dtype), w2_ref[...],
                preferred_element_type=jnp.float32)
    y = y + b2_ref[...]            # (tb, D) + (1, D) broadcast, f32
    o_ref[...] = y.astype(o_ref.dtype)


def _pick_batch_tile(B, tb_max):
    """Largest MXU-friendly batch tile that divides B (<= tb_max)."""
    tb = min(tb_max, B)
    if B % tb == 0:
        return tb
    for cand in (256, 128, 64, 32, 16, 8):
        if cand <= tb and B % cand == 0:
            return cand
    return B  # single full-batch tile (full-dim block is always legal)


def additional_model_forward(x, w1_t, b1, w2_t, b2, *, tb=256,
                             compute_dtype=jnp.bfloat16):
    """x: (B, D) f32; w1_t: (D, H); b1: (H,); w2_t: (H, D); b2: (D,).

    Returns (B, D) float32. Matmul operands run in `compute_dtype`
    (bf16 by default) with float32 accumulation / epilogue.
    """
    B, D = x.shape
    H = w1_t.shape[1]
    tb = _pick_batch_tile(B, tb)

    cdt = compute_dtype if compute_dtype is not None else x.dtype
    x_c = x.astype(cdt)
    w1_c = w1_t.astype(cdt)
    w2_c = w2_t.astype(cdt)
    b1_row = b1.reshape(1, H).astype(jnp.float32)
    b2_row = b2.reshape(1, D).astype(jnp.float32)

    nbytes = lambda a: int(a.size) * a.dtype.itemsize
    cost = pl.CostEstimate(
        flops=4 * B * D * H,                       # two (B,D,H) matmuls
        transcendentals=B * H,                     # tanh
        bytes_accessed=(nbytes(x_c) + nbytes(w1_c) + nbytes(w2_c)
                        + nbytes(b1_row) + nbytes(b2_row) + B * D * 4),
    )

    return pl.pallas_call(
        mlp_kernel,
        out_shape=jax.ShapeDtypeStruct((B, D), jnp.float32),
        grid_spec=pltpu.PrefetchScalarGridSpec(
            num_scalar_prefetch=0,
            grid=(B // tb,),
            in_specs=[
                pl.BlockSpec((tb, D), lambda i: (i, 0)),   # x tile (pipelined)
                pl.BlockSpec((D, H), lambda i: (0, 0)),    # W1^T, grid-invariant
                pl.BlockSpec((1, H), lambda i: (0, 0)),    # b1
                pl.BlockSpec((H, D), lambda i: (0, 0)),    # W2^T, grid-invariant
                pl.BlockSpec((1, D), lambda i: (0, 0)),    # b2
            ],
            out_specs=pl.BlockSpec((tb, D), lambda i: (i, 0)),
        ),
        compiler_params=pltpu.CompilerParams(
            dimension_semantics=("parallel",),     # shard batch across v7x TCs
        ),
        cost_estimate=cost,
    )(x_c, w1_c, b1_row, w2_c, b2_row)


def init_params(key, d_in, hidden):
    """Deterministic init mimicking nn.Linear default (uniform +-1/sqrt(fan_in))."""
    k1, k2, k3, k4 = jax.random.split(key, 4)
    lim1 = 1.0 / jnp.sqrt(d_in)
    lim2 = 1.0 / jnp.sqrt(hidden)
    w1 = jax.random.uniform(k1, (hidden, d_in), jnp.float32, -lim1, lim1)  # torch (out,in)
    b1 = jax.random.uniform(k2, (hidden,), jnp.float32, -lim1, lim1)
    w2 = jax.random.uniform(k3, (d_in, hidden), jnp.float32, -lim2, lim2)
    b2 = jax.random.uniform(k4, (d_in,), jnp.float32, -lim2, lim2)
    return w1, b1, w2, b2


if __name__ == "__main__":
    # Shapes: N=24, n=8 -> D = 32; hidden = 1024; batch = 512 so the default
    # tb=256 gives grid=(2,) (exercises pipelining / both v7x TensorCores)
    # while staying tiny (total params ~64K, x is 64 KiB).
    N, n = 24, 8
    D = N + n
    H = 1024
    B = 512

    key = jax.random.PRNGKey(0)
    kx, kp = jax.random.split(key)
    x = jax.random.normal(kx, (B, D), jnp.float32)
    w1, b1, w2, b2 = init_params(kp, D, H)

    # Pre-transpose weights to (in, out) layout for the kernel.
    y = additional_model_forward(x, w1.T, b1, w2.T, b2)
    y = jax.block_until_ready(y)
    assert y.shape == (B, D) and y.dtype == jnp.float32

    # Reference with the same bf16-rounded operands and f32 accumulation,
    # matching the kernel's mixed-precision recipe.
    f32 = jnp.float32
    xq = x.astype(jnp.bfloat16).astype(f32)
    w1q = w1.astype(jnp.bfloat16).astype(f32)
    w2q = w2.astype(jnp.bfloat16).astype(f32)
    hq = jnp.tanh(xq @ w1q.T + b1).astype(jnp.bfloat16).astype(f32)
    y_ref = hq @ w2q.T + b2
    assert jnp.allclose(y, y_ref, atol=2e-3, rtol=2e-3)

    print("KERNEL_OK")
</pallas_src>

<mosaic_0001>
module attributes {stable_mosaic.version = 11 : i64} {
  func.func @mlp_kernel(%arg0: i32, %arg1: memref<256x32xbf16, #tpu.memory_space<vmem>>, %arg2: memref<32x1024xbf16, #tpu.memory_space<vmem>>, %arg3: memref<1x1024xf32, #tpu.memory_space<vmem>>, %arg4: memref<1024x32xbf16, #tpu.memory_space<vmem>>, %arg5: memref<1x32xf32, #tpu.memory_space<vmem>>, %arg6: memref<256x32xf32, #tpu.memory_space<vmem>>) attributes {dimension_semantics = [#tpu.dimension_semantics<parallel>], iteration_bounds = array<i64: 2>, scalar_prefetch = 0 : i64, scratch_operands = 0 : i64, tpu.core_type = #tpu.core_type<tc>, window_params = [{transform_indices = @transform_0, window_bounds = array<i64: 256, 32>}, {pipeline_mode = #tpu.pipeline_mode<synchronous>, transform_indices = @transform_1, window_bounds = array<i64: 32, 1024>}, {pipeline_mode = #tpu.pipeline_mode<synchronous>, transform_indices = @transform_2, window_bounds = array<i64: 1, 1024>}, {pipeline_mode = #tpu.pipeline_mode<synchronous>, transform_indices = @transform_3, window_bounds = array<i64: 1024, 32>}, {pipeline_mode = #tpu.pipeline_mode<synchronous>, transform_indices = @transform_4, window_bounds = array<i64: 1, 32>}, {transform_indices = @transform_5, window_bounds = array<i64: 256, 32>}]} {
    %c0 = arith.constant 0 : index
    %c0_0 = arith.constant 0 : index
    %0 = vector.load %arg1[%c0, %c0_0] : memref<256x32xbf16, #tpu.memory_space<vmem>>, vector<256x32xbf16>
    %c0_1 = arith.constant 0 : index
    %c0_2 = arith.constant 0 : index
    %1 = vector.load %arg2[%c0_1, %c0_2] : memref<32x1024xbf16, #tpu.memory_space<vmem>>, vector<32x1024xbf16>
    %cst = arith.constant dense<0.000000e+00> : vector<256x1024xf32>
    %2 = tpu.matmul %0, %1, %cst {dimension_numbers = #tpu.dot_dimension_numbers<[1], [0], [0], [1], [0, 0, 1, 1], [], []>} : vector<256x32xbf16>, vector<32x1024xbf16>, vector<256x1024xf32> -> vector<256x1024xf32>
    %c0_3 = arith.constant 0 : index
    %c0_4 = arith.constant 0 : index
    %3 = vector.load %arg3[%c0_3, %c0_4] : memref<1x1024xf32, #tpu.memory_space<vmem>>, vector<1x1024xf32>
    %4 = vector.broadcast %3 : vector<1x1024xf32> to vector<256x1024xf32>
    %5 = arith.addf %2, %4 : vector<256x1024xf32>
    %6 = math.tanh %5 : vector<256x1024xf32>
    %7 = arith.truncf %6 : vector<256x1024xf32> to vector<256x1024xbf16>
    %c0_5 = arith.constant 0 : index
    %c0_6 = arith.constant 0 : index
    %8 = vector.load %arg4[%c0_5, %c0_6] : memref<1024x32xbf16, #tpu.memory_space<vmem>>, vector<1024x32xbf16>
    %cst_7 = arith.constant dense<0.000000e+00> : vector<256x32xf32>
    %9 = tpu.matmul %7, %8, %cst_7 {dimension_numbers = #tpu.dot_dimension_numbers<[1], [0], [0], [1], [0, 0, 1, 1], [], []>} : vector<256x1024xbf16>, vector<1024x32xbf16>, vector<256x32xf32> -> vector<256x32xf32>
    %c0_8 = arith.constant 0 : index
    %c0_9 = arith.constant 0 : index
    %10 = vector.load %arg5[%c0_8, %c0_9] : memref<1x32xf32, #tpu.memory_space<vmem>>, vector<1x32xf32>
    %11 = vector.broadcast %10 : vector<1x32xf32> to vector<256x32xf32>
    %12 = arith.addf %9, %11 : vector<256x32xf32>
    %c0_10 = arith.constant 0 : index
    %c0_11 = arith.constant 0 : index
    %13 = vector.load %arg6[%c0_10, %c0_11] : memref<256x32xf32, #tpu.memory_space<vmem>>, vector<256x32xf32>
    tpu.vector_store %arg6[%c0_10, %c0_11], %12 {strides = array<i32>} : memref<256x32xf32, #tpu.memory_space<vmem>>, vector<256x32xf32>,
    return
  }
  func.func @transform_0(%arg0: i32) -> (i32, i32) {
    %c0_i32 = arith.constant 0 : i32
    %c0_i32_0 = arith.constant 0 : i32
    return %arg0, %c0_i32 : i32, i32
  }
  func.func @transform_1(%arg0: i32) -> (i32, i32) {
    %c0_i32 = arith.constant 0 : i32
    %c0_i32_0 = arith.constant 0 : i32
    %c0_i32_1 = arith.constant 0 : i32
    return %c0_i32, %c0_i32_0 : i32, i32
  }
  func.func @transform_2(%arg0: i32) -> (i32, i32) {
    %c0_i32 = arith.constant 0 : i32
    %c0_i32_0 = arith.constant 0 : i32
    %c0_i32_1 = arith.constant 0 : i32
    return %c0_i32, %c0_i32_0 : i32, i32
  }
  func.func @transform_3(%arg0: i32) -> (i32, i32) {
    %c0_i32 = arith.constant 0 : i32
    %c0_i32_0 = arith.constant 0 : i32
    %c0_i32_1 = arith.constant 0 : i32
    return %c0_i32, %c0_i32_0 : i32, i32
  }
  func.func @transform_4(%arg0: i32) -> (i32, i32) {
    %c0_i32 = arith.constant 0 : i32
    %c0_i32_0 = arith.constant 0 : i32
    %c0_i32_1 = arith.constant 0 : i32
    return %c0_i32, %c0_i32_0 : i32, i32
  }
  func.func @transform_5(%arg0: i32) -> (i32, i32) {
    %c0_i32 = arith.constant 0 : i32
    %c0_i32_0 = arith.constant 0 : i32
    return %arg0, %c0_i32 : i32, i32
  }
}

</mosaic_0001>

<llo_original>
// kernel: tpu_custom_call.1
$region0: #{tpu_custom_call.1}
  #allocation0 [shape = 'u32[]', space=smem, size = 0x4, offset = 0x4, fixed_abs, tag = 'smem constant byte address 0x4 - core index']
  #allocation1 [shape = 'u32[144,128]{1,0:T(1,128)}', space=vmem, size = 0x12000, scoped, tag = 'internal scratch']
  %s0 = inlined_call_operand.vmem [shape: bf16[512,32], index: 0, kind: input, shape index: {}]
  %s1 = inlined_call_operand.vmem [shape: bf16[32,1024], index: 1, kind: input, shape index: {}]
  %s2 = inlined_call_operand.vmem [shape: f32[1,1024], index: 2, kind: input, shape index: {}]
  %s3 = inlined_call_operand.vmem [shape: bf16[1024,32], index: 3, kind: input, shape index: {}]
  %s4 = inlined_call_operand.vmem [shape: f32[1,32], index: 4, kind: input, shape index: {}]
  %s5 = inlined_call_operand.vmem [shape: f32[512,32], index: 5, kind: output, shape index: {}]
  %s6 = sld [smem:[#allocation0]]
  $region53: #{tpu_custom_call.1} parent=0
    _
  %s8 = ssub.s32 1, %s6
  %s9 = scalar_select 0, %s8, %s6
  loop: start=0, step=1, limit=4
  $region2: #{tpu_custom_call.1} parent=0 // loop_pre_header
    _
  $region3: #{tpu_custom_call.1} parent=0 // loop_header
    %s11 = sphi 0, %s15
    %p12 = scmp.ge.s32.totalorder %s11, 4
    %s21 = sphi 0, %s23
    %s24 = sphi 0, %s21
    %s25 = sphi 0, %s24
    %s41 = sphi 0, %s25
    %s45 = sphi 0, %s45
    %s47 = sphi 0, %s45
    %s48 = sphi 0, %s47
    %s62 = sphi 0, %s48
    %s66 = sphi 0, %s66
    %s68 = sphi 0, %s66
    %s69 = sphi 0, %s68
    %s83 = sphi 0, %s69
    %s87 = sphi 0, %s87
    %s89 = sphi 0, %s87
    %s90 = sphi 0, %s89
    %s104 = sphi 0, %s90
    %s108 = sphi 0, %s108
    %s110 = sphi 0, %s108
    %s111 = sphi 0, %s110
    %s125 = sphi 0, %s111
    %s131 = sphi 0, %s133
    %s134 = sphi 0, %s131
    %s135 = sphi 0, %s134
    %s151 = sphi 0, %s135
  $region4: #{tpu_custom_call.1} parent=0 // loop_header_branch
    %14 = sbr.rel (%p12) target = $region8
  $region5: #{tpu_custom_call.1} parent=0 // loop_body
    %s16 = ssub.s32 %s11, 1
    %s17 = ssub.s32 %s11, 2
    %s18 = sadd.s32 %s11, 1
    %s19 = ssub.s32 %s11, %s18
    %p20 = scmp.eq.s32.totalorder %s19, 0
    %s22 = sadd.s32 %s21, 1
    %s23 = scalar_select %p20, %s21, %s22
    %p26 = pneg %p20
    %p27 = scmp.eq.s32.totalorder %s11, 1
    %p28 = por %p26, %p27
    %p29 = scmp.ne.s32.totalorder %s21, %s24
    %p30 = scmp.eq.s32.totalorder %s11, 0
    %p31 = por %p29, %p30
    %p32 = scmp.ne.s32.totalorder %s21, %s24
    %p33 = scmp.eq.s32.totalorder %s16, 1
    %p34 = por %p32, %p33
    %p35 = scmp.ne.s32.totalorder %s24, %s25
    %p36 = scmp.eq.s32.totalorder %s16, 0
    %p37 = por %p35, %p36
    %p38 = scmp.ne.s32.totalorder %s24, %s25
    %p39 = scmp.eq.s32.totalorder %s17, 1
    %p40 = por %p38, %p39
    %p42 = scmp.ne.s32.totalorder %s25, %s41
    %p43 = scmp.eq.s32.totalorder %s17, 0
    %p44 = por %p42, %p43
    %s46 = sadd.s32 %s45, 1
    %p49 = scmp.eq.s32.totalorder %s11, 1
    %p50 = scmp.ne.s32.totalorder %s45, %s47
    %p51 = scmp.eq.s32.totalorder %s11, 0
    %p52 = por %p50, %p51
    %p53 = scmp.ne.s32.totalorder %s45, %s47
    %p54 = scmp.eq.s32.totalorder %s16, 1
    %p55 = por %p53, %p54
    %p56 = scmp.ne.s32.totalorder %s47, %s48
    %p57 = scmp.eq.s32.totalorder %s16, 0
    %p58 = por %p56, %p57
    %p59 = scmp.ne.s32.totalorder %s47, %s48
    %p60 = scmp.eq.s32.totalorder %s17, 1
    %p61 = por %p59, %p60
    %p63 = scmp.ne.s32.totalorder %s48, %s62
    %p64 = scmp.eq.s32.totalorder %s17, 0
    %p65 = por %p63, %p64
    %s67 = sadd.s32 %s66, 1
    %p70 = scmp.eq.s32.totalorder %s11, 1
    %p71 = scmp.ne.s32.totalorder %s66, %s68
    %p72 = scmp.eq.s32.totalorder %s11, 0
    %p73 = por %p71, %p72
    %p74 = scmp.ne.s32.totalorder %s66, %s68
    %p75 = scmp.eq.s32.totalorder %s16, 1
    %p76 = por %p74, %p75
    %p77 = scmp.ne.s32.totalorder %s68, %s69
    %p78 = scmp.eq.s32.totalorder %s16, 0
    %p79 = por %p77, %p78
    %p80 = scmp.ne.s32.totalorder %s68, %s69
    %p81 = scmp.eq.s32.totalorder %s17, 1
    %p82 = por %p80, %p81
    %p84 = scmp.ne.s32.totalorder %s69, %s83
    %p85 = scmp.eq.s32.totalorder %s17, 0
    %p86 = por %p84, %p85
    %s88 = sadd.s32 %s87, 1
    %p91 = scmp.eq.s32.totalorder %s11, 1
    %p92 = scmp.ne.s32.totalorder %s87, %s89
    %p93 = scmp.eq.s32.totalorder %s11, 0
    %p94 = por %p92, %p93
    %p95 = scmp.ne.s32.totalorder %s87, %s89
    %p96 = scmp.eq.s32.totalorder %s16, 1
    %p97 = por %p95, %p96
    %p98 = scmp.ne.s32.totalorder %s89, %s90
    %p99 = scmp.eq.s32.totalorder %s16, 0
    %p100 = por %p98, %p99
    %p101 = scmp.ne.s32.totalorder %s89, %s90
    %p102 = scmp.eq.s32.totalorder %s17, 1
    %p103 = por %p101, %p102
    %p105 = scmp.ne.s32.totalorder %s90, %s104
    %p106 = scmp.eq.s32.totalorder %s17, 0
    %p107 = por %p105, %p106
    %s109 = sadd.s32 %s108, 1
    %p112 = scmp.eq.s32.totalorder %s11, 1
    %p113 = scmp.ne.s32.totalorder %s108, %s110
    %p114 = scmp.eq.s32.totalorder %s11, 0
    %p115 = por %p113, %p114
    %p116 = scmp.ne.s32.totalorder %s108, %s110
    %p117 = scmp.eq.s32.totalorder %s16, 1
    %p118 = por %p116, %p117
    %p119 = scmp.ne.s32.totalorder %s110, %s111
    %p120 = scmp.eq.s32.totalorder %s16, 0
    %p121 = por %p119, %p120
    %p122 = scmp.ne.s32.totalorder %s110, %s111
    %p123 = scmp.eq.s32.totalorder %s17, 1
    %p124 = por %p122, %p123
    %p126 = scmp.ne.s32.totalorder %s111, %s125
    %p127 = scmp.eq.s32.totalorder %s17, 0
    %p128 = por %p126, %p127
    %s129 = ssub.s32 %s11, %s18
    %p130 = scmp.eq.s32.totalorder %s129, 0
    %s132 = sadd.s32 %s131, 1
    %s133 = scalar_select %p130, %s131, %s132
    %p136 = pneg %p130
    %p137 = scmp.eq.s32.totalorder %s11, 1
    %p138 = por %p136, %p137
    %p139 = scmp.ne.s32.totalorder %s131, %s134
    %p140 = scmp.eq.s32.totalorder %s11, 0
    %p141 = por %p139, %p140
    %p142 = scmp.ne.s32.totalorder %s131, %s134
    %p143 = scmp.eq.s32.totalorder %s16, 1
    %p144 = por %p142, %p143
    %p145 = scmp.ne.s32.totalorder %s134, %s135
    %p146 = scmp.eq.s32.totalorder %s16, 0
    %p147 = por %p145, %p146
    %p148 = scmp.ne.s32.totalorder %s134, %s135
    %p149 = scmp.eq.s32.totalorder %s17, 1
    %p150 = por %p148, %p149
    %p152 = scmp.ne.s32.totalorder %s135, %s151
    %p153 = scmp.eq.s32.totalorder %s17, 0
    %p154 = por %p152, %p153
    %p155 = scmp.le.s32.totalorder 1, %s11
    %p156 = scmp.lt.s32.totalorder %s11, 3
    %p157 = pnand %p155, %p156
    %p158 = pneg %p157
    // Predicated region
    $region9: #{tpu_custom_call.1} parent=5 // pred_check
      _
    $region10: #{tpu_custom_call.1} parent=5 // pred_check_branch
      %160 = sbr.rel (%p157) target = $region12
    $region11: #{tpu_custom_call.1} parent=5 // pred_region
      %s161 = ssub.s32 %s11, 1
      // Predicated region
      $region13: #{tpu_custom_call.1} parent=11 // pred_check
        %p162 = pneg %p58
      $region14: #{tpu_custom_call.1} parent=11 // pred_check_branch
        %164 = sbr.rel (%p162) target = $region16
      $region15: #{tpu_custom_call.1} parent=11 // pred_region
        _
      $region16: #{tpu_custom_call.1} parent=11 // pred_fallthru
        _
      // Predicated region
      $region17: #{tpu_custom_call.1} parent=11 // pred_check
        %p165 = pneg %p79
      $region18: #{tpu_custom_call.1} parent=11 // pred_check_branch
        %167 = sbr.rel (%p165) target = $region20
      $region19: #{tpu_custom_call.1} parent=11 // pred_region
        _
      $region20: #{tpu_custom_call.1} parent=11 // pred_fallthru
        _
      // Predicated region
      $region21: #{tpu_custom_call.1} parent=11 // pred_check
        %p168 = pneg %p100
      $region22: #{tpu_custom_call.1} parent=11 // pred_check_branch
        %170 = sbr.rel (%p168) target = $region24
      $region23: #{tpu_custom_call.1} parent=11 // pred_region
        _
      $region24: #{tpu_custom_call.1} parent=11 // pred_fallthru
        _
      // Predicated region
      $region25: #{tpu_custom_call.1} parent=11 // pred_check
        %p171 = pneg %p121
      $region26: #{tpu_custom_call.1} parent=11 // pred_check_branch
        %173 = sbr.rel (%p171) target = $region28
      $region27: #{tpu_custom_call.1} parent=11 // pred_region
        _
      $region28: #{tpu_custom_call.1} parent=11 // pred_fallthru
        _
    $region12: #{tpu_custom_call.1} parent=5 // pred_fallthru
      _
    %p174 = scmp.lt.s32.totalorder %s11, 2
    // Predicated region
    $region29: #{tpu_custom_call.1} parent=5 // pred_check
      %p175 = pneg %p174
    $region30: #{tpu_custom_call.1} parent=5 // pred_check_branch
      %177 = sbr.rel (%p175) target = $region32
    $region31: #{tpu_custom_call.1} parent=5 // pred_region
      // Predicated region
      $region33: #{tpu_custom_call.1} parent=31 // pred_check
        %p178 = pneg %p31
      $region34: #{tpu_custom_call.1} parent=31 // pred_check_branch
        %180 = sbr.rel (%p178) target = $region36
      $region35: #{tpu_custom_call.1} parent=31 // pred_region
        %s181 = smul.u32 32, %s11
        %p182 = scmp.lt.s32.totalorder %s181, 63
        %s183 = scalar_select %p182, %s181, 63
        %s184 = smul.addr %s183, 4
        %s185 = scalar_lea.vmem %s0, %s184
        %s186 = smul.u32 32, %s11
      $region36: #{tpu_custom_call.1} parent=31 // pred_fallthru
        _
    $region32: #{tpu_custom_call.1} parent=5 // pred_fallthru
      _
    %p187 = scmp.le.s32.totalorder 1, %s11
    %p188 = scmp.lt.s32.totalorder %s11, 3
    %p189 = pnand %p187, %p188
    %p190 = pneg %p189
    // Predicated region
    $region37: #{tpu_custom_call.1} parent=5 // pred_check
      _
    $region38: #{tpu_custom_call.1} parent=5 // pred_check_branch
      %192 = sbr.rel (%p189) target = $region40
    $region39: #{tpu_custom_call.1} parent=5 // pred_region
      %s193 = ssub.s32 %s11, 1
      %s194 = smul.u32 32, %s16
      %p195 = scmp.lt.s32.totalorder %s194, 63
      %s196 = scalar_select %p195, %s194, 63
      %s197 = smul.addr %s196, 4
      %s198 = scalar_lea.vmem %s0, %s197
      %p199 = pneg %p37
      %p200 = pneg %p34
      %p201 = pneg %p58
      %p202 = pneg %p55
      %p203 = pneg %p79
      %p204 = pneg %p76
      %p205 = pneg %p100
      %p206 = pneg %p97
      %p207 = pneg %p121
      %p208 = pneg %p118
      %p209 = pneg %p147
      %p210 = pneg %p144
      %s211 = smul.u32 32, %s16
      %p212 = scmp.lt.s32.totalorder %s211, 63
      %s213 = scalar_select %p212, %s211, 63
      %s214 = smul.addr %s213, 8
      %s215 = scalar_lea.vmem %s5, %s214
      %s216 = smul.u32 32, %s16
      %p217 = scmp.lt.s32.totalorder %s216, 63
      %s218 = scalar_select %p217, %s216, 63
      %s219 = smul.addr %s218, 4
      %s220 = scalar_lea.vmem %s0, %s219
      %s221 = smul.u32 32, %s16
      %s222 = smul.u32 32, %s16
      %p223 = scmp.lt.s32.totalorder %s222, 63
      %s224 = scalar_select %p223, %s222, 63
      %s225 = smul.addr %s224, 8
      %s226 = scalar_lea.vmem %s5, %s225
      %s227 = smul.u32 32, %s16
      %v229 = vld [vmem:[%s220] sm:$0xf]
      %v230 = vld [vmem:[%s220 + $0x4] sm:$0xf]
      %v231 = vld [vmem:[%s220 + $0x8] sm:$0xf]
      %v232 = vld [vmem:[%s220 + $0xc] sm:$0xf]
      %v233 = vld [vmem:[%s220 + $0x10] sm:$0xf]
      %v234 = vld [vmem:[%s220 + $0x14] sm:$0xf]
      %v235 = vld [vmem:[%s220 + $0x18] sm:$0xf]
      %v236 = vld [vmem:[%s220 + $0x1c] sm:$0xf]
      %v237 = vld [vmem:[%s220 + $0x20] sm:$0xf]
      %v238 = vld [vmem:[%s220 + $0x24] sm:$0xf]
      %v239 = vld [vmem:[%s220 + $0x28] sm:$0xf]
      %v240 = vld [vmem:[%s220 + $0x2c] sm:$0xf]
      %v241 = vld [vmem:[%s220 + $0x30] sm:$0xf]
      %v242 = vld [vmem:[%s220 + $0x34] sm:$0xf]
      %v243 = vld [vmem:[%s220 + $0x38] sm:$0xf]
      %v244 = vld [vmem:[%s220 + $0x3c] sm:$0xf]
      %v245 = vld [vmem:[%s220 + $0x40] sm:$0xf]
      %v246 = vld [vmem:[%s220 + $0x44] sm:$0xf]
      %v247 = vld [vmem:[%s220 + $0x48] sm:$0xf]
      %v248 = vld [vmem:[%s220 + $0x4c] sm:$0xf]
      %v249 = vld [vmem:[%s220 + $0x50] sm:$0xf]
      %v250 = vld [vmem:[%s220 + $0x54] sm:$0xf]
      %v251 = vld [vmem:[%s220 + $0x58] sm:$0xf]
      %v252 = vld [vmem:[%s220 + $0x5c] sm:$0xf]
      %v253 = vld [vmem:[%s220 + $0x60] sm:$0xf]
      %v254 = vld [vmem:[%s220 + $0x64] sm:$0xf]
      %v255 = vld [vmem:[%s220 + $0x68] sm:$0xf]
      %v256 = vld [vmem:[%s220 + $0x6c] sm:$0xf]
      %v257 = vld [vmem:[%s220 + $0x70] sm:$0xf]
      %v258 = vld [vmem:[%s220 + $0x74] sm:$0xf]
      %v259 = vld [vmem:[%s220 + $0x78] sm:$0xf]
      %v260 = vld [vmem:[%s220 + $0x7c] sm:$0xf]
      %v261 = vld [vmem:[%s1] sm:$0xff]
      %v262 = vld [vmem:[%s1 + $0x8] sm:$0xff]
      %v263 = vld [vmem:[%s1 + $0x10] sm:$0xff]
      %v264 = vld [vmem:[%s1 + $0x18] sm:$0xff]
      %v265 = vld [vmem:[%s1 + $0x20] sm:$0xff]
      %v266 = vld [vmem:[%s1 + $0x28] sm:$0xff]
      %v267 = vld [vmem:[%s1 + $0x30] sm:$0xff]
      %v268 = vld [vmem:[%s1 + $0x38] sm:$0xff]
      %v269 = vld [vmem:[%s1 + $0x40] sm:$0xff]
      %v270 = vld [vmem:[%s1 + $0x48] sm:$0xff]
      %v271 = vld [vmem:[%s1 + $0x50] sm:$0xff]
      %v272 = vld [vmem:[%s1 + $0x58] sm:$0xff]
      %v273 = vld [vmem:[%s1 + $0x60] sm:$0xff]
      %v274 = vld [vmem:[%s1 + $0x68] sm:$0xff]
      %v275 = vld [vmem:[%s1 + $0x70] sm:$0xff]
      %v276 = vld [vmem:[%s1 + $0x78] sm:$0xff]
      %v277 = vld [vmem:[%s2] sm:$0xff]
      %v279 = vlaneseq
      %v280 = vshrl.u32 %v279, 7
      %v281 = vsub.s32 0, %v280
      %v282 = vrot.slane %v277, %v281
      %v283 = vlaneseq
      %v284 = vshrl.u32 %v283, 7
      %v285 = vsub.s32 1, %v284
      %v286 = vrot.slane %v277, %v285
      %v287 = vlaneseq
      %v288 = vshrl.u32 %v287, 7
      %v289 = vsub.s32 2, %v288
      %v290 = vrot.slane %v277, %v289
      %v291 = vlaneseq
      %v292 = vshrl.u32 %v291, 7
      %v293 = vsub.s32 3, %v292
      %v294 = vrot.slane %v277, %v293
      %v295 = vlaneseq
      %v296 = vshrl.u32 %v295, 7
      %v297 = vsub.s32 4, %v296
      %v298 = vrot.slane %v277, %v297
      %v299 = vlaneseq
      %v300 = vshrl.u32 %v299, 7
      %v301 = vsub.s32 5, %v300
      %v302 = vrot.slane %v277, %v301
      %v303 = vlaneseq
      %v304 = vshrl.u32 %v303, 7
      %v305 = vsub.s32 6, %v304
      %v306 = vrot.slane %v277, %v305
      %v307 = vlaneseq
      %v308 = vshrl.u32 %v307, 7
      %v309 = vsub.s32 7, %v308
      %v310 = vrot.slane %v277, %v309
      %v351 = vunpack.c.l.b16 %v229
      %v352 = vunpack.c.l.b16 %v230
      %v353 = vunpack.c.l.b16 %v231
      %v354 = vunpack.c.l.b16 %v232
      %v355 = vunpack.c.l.b16 %v233
      %v356 = vunpack.c.l.b16 %v234
      %v357 = vunpack.c.l.b16 %v235
      %v358 = vunpack.c.l.b16 %v236
      %v359 = vunpack.c.l.b16 %v237
      %v360 = vunpack.c.l.b16 %v238
      %v361 = vunpack.c.l.b16 %v239
      %v362 = vunpack.c.l.b16 %v240
      %v363 = vunpack.c.l.b16 %v241
      %v364 = vunpack.c.l.b16 %v242
      %v365 = vunpack.c.l.b16 %v243
      %v366 = vunpack.c.l.b16 %v244
      %v367 = vunpack.c.l.b16 %v245
      %v368 = vunpack.c.l.b16 %v246
      %v369 = vunpack.c.l.b16 %v247
      %v370 = vunpack.c.l.b16 %v248
      %v371 = vunpack.c.l.b16 %v249
      %v372 = vunpack.c.l.b16 %v250
      %v373 = vunpack.c.l.b16 %v251
      %v374 = vunpack.c.l.b16 %v252
      %v375 = vunpack.c.l.b16 %v253
      %v376 = vunpack.c.l.b16 %v254
      %v377 = vunpack.c.l.b16 %v255
      %v378 = vunpack.c.l.b16 %v256
      %v379 = vunpack.c.l.b16 %v257
      %v380 = vunpack.c.l.b16 %v258
      %v381 = vunpack.c.l.b16 %v259
      %v382 = vunpack.c.l.b16 %v260
      %v383 = vpack.c.b16 %v352, %v351
      %v384 = vpack.c.b16 %v354, %v353
      %v385 = vpack.c.b16 %v356, %v355
      %v386 = vpack.c.b16 %v358, %v357
      %v387 = vpack.c.b16 %v360, %v359
      %v388 = vpack.c.b16 %v362, %v361
      %v389 = vpack.c.b16 %v364, %v363
      %v390 = vpack.c.b16 %v366, %v365
      %v391 = vpack.c.b16 %v368, %v367
      %v392 = vpack.c.b16 %v370, %v369
      %v393 = vpack.c.b16 %v372, %v371
      %v394 = vpack.c.b16 %v374, %v373
      %v395 = vpack.c.b16 %v376, %v375
      %v396 = vpack.c.b16 %v378, %v377
      %v397 = vpack.c.b16 %v380, %v379
      %v398 = vpack.c.b16 %v382, %v381
      %v415 = vunpack.c.l.b16 %v261
      %v416 = vunpack.c.h.b16 %v261
      %v417 = vunpack.c.l.b16 %v262
      %v418 = vunpack.c.h.b16 %v262
      %v419 = vunpack.c.l.b16 %v263
      %v420 = vunpack.c.h.b16 %v263
      %v421 = vunpack.c.l.b16 %v264
      %v422 = vunpack.c.h.b16 %v264
      %v423 = vunpack.c.l.b16 %v265
      %v424 = vunpack.c.h.b16 %v265
      %v425 = vunpack.c.l.b16 %v266
      %v426 = vunpack.c.h.b16 %v266
      %v427 = vunpack.c.l.b16 %v267
      %v428 = vunpack.c.h.b16 %v267
      %v429 = vunpack.c.l.b16 %v268
      %v430 = vunpack.c.h.b16 %v268
      %v431 = vunpack.c.l.b16 %v269
      %v432 = vunpack.c.h.b16 %v269
      %v433 = vunpack.c.l.b16 %v270
      %v434 = vunpack.c.h.b16 %v270
      %v435 = vunpack.c.l.b16 %v271
      %v436 = vunpack.c.h.b16 %v271
      %v437 = vunpack.c.l.b16 %v272
      %v438 = vunpack.c.h.b16 %v272
      %v439 = vunpack.c.l.b16 %v273
      %v440 = vunpack.c.h.b16 %v273
      %v441 = vunpack.c.l.b16 %v274
      %v442 = vunpack.c.h.b16 %v274
      %v443 = vunpack.c.l.b16 %v275
      %v444 = vunpack.c.h.b16 %v275
      %v445 = vunpack.c.l.b16 %v276
      %v446 = vunpack.c.h.b16 %v276
      %v447 = vpack.c.b16 %v423, %v415
      %v448 = vpack.c.b16 %v424, %v416
      %v449 = vpack.c.b16 %v425, %v417
      %v450 = vpack.c.b16 %v426, %v418
      %v451 = vpack.c.b16 %v427, %v419
      %v452 = vpack.c.b16 %v428, %v420
      %v453 = vpack.c.b16 %v429, %v421
      %v454 = vpack.c.b16 %v430, %v422
      %v455 = vpack.c.b16 %v439, %v431
      %v456 = vpack.c.b16 %v440, %v432
      %v457 = vpack.c.b16 %v441, %v433
      %v458 = vpack.c.b16 %v442, %v434
      %v459 = vpack.c.b16 %v443, %v435
      %v460 = vpack.c.b16 %v444, %v436
      %v461 = vpack.c.b16 %v445, %v437
      %v462 = vpack.c.b16 %v446, %v438
      %vm479 = vcmask 261120
      %v481 = vsel %vm479, %v383, 0
      %v484 = vsel %vm479, %v384, 0
      %v487 = vsel %vm479, %v385, 0
      %v490 = vsel %vm479, %v386, 0
      %v493 = vsel %vm479, %v387, 0
      %v496 = vsel %vm479, %v388, 0
      %v499 = vsel %vm479, %v389, 0
      %v502 = vsel %vm479, %v390, 0
      %v505 = vsel %vm479, %v391, 0
      %v508 = vsel %vm479, %v392, 0
      %v511 = vsel %vm479, %v393, 0
      %v514 = vsel %vm479, %v394, 0
      %v517 = vsel %vm479, %v395, 0
      %v520 = vsel %vm479, %v396, 0
      %v523 = vsel %vm479, %v397, 0
      %v526 = vsel %vm479, %v398, 0
      %528 = vmatprep.subr.bf16.mxu0 0
      %529 = vmatpush1.bf16.msra.mxu0 0
      %530 = vmatprep.subr.bf16.mxu0 0
      %531 = vmatpush1.bf16.msra.mxu0 0
      %532 = vmatprep.subr.bf16.mxu0 0
      %533 = vmatpush1.bf16.msra.mxu0 0
      %534 = vmatprep.subr.bf16.mxu0 0
      %535 = vmatpush1.bf16.msra.mxu0 0
      %536 = vmatprep.subr.bf16.mxu0 0
      %537 = vmatpush1.bf16.msra.mxu0 0
      %538 = vmatprep.subr.bf16.mxu0 0
      %539 = vmatpush1.bf16.msra.mxu0 0
      %540 = vmatprep.subr.bf16.mxu0 %v456
      %541 = vmatpush1.bf16.msra.mxu0 %v455
      %542 = vmatprep.subr.bf16.mxu0 %v448
      %543 = vmatpush1.bf16.msra.mxu0 %v447
      %544 = vmatprep.subr.bf16.mxu0 0
      %545 = vmatpush2.bf16.msra.mxu0 0
      %546 = vmatprep.subr.bf16.mxu0 0
      %547 = vmatpush2.bf16.msra.mxu0 0
      %548 = vmatprep.subr.bf16.mxu0 0
      %549 = vmatpush2.bf16.msra.mxu0 0
      %550 = vmatprep.subr.bf16.mxu0 0
      %551 = vmatpush2.bf16.msra.mxu0 0
      %552 = vmatprep.subr.bf16.mxu0 0
      %553 = vmatpush2.bf16.msra.mxu0 0
      %554 = vmatprep.subr.bf16.mxu0 0
      %555 = vmatpush2.bf16.msra.mxu0 0
      %556 = vmatprep.subr.bf16.mxu0 0
      %557 = vmatpush2.bf16.msra.mxu0 0
      %558 = vmatprep.subr.bf16.mxu0 0
      %559 = vmatpush2.bf16.msra.mxu0 0
      %560 = vmatprep.mubr.bf16.mxu0 0
      %561 = vmatmul.mubr.bf16.gmra.mxu0 %v481
      %v562 = vpop.f32.mrf.mxu0
      %v563 = vadd.f32 %v282, %v562
      %v564 = vpop.f32.mrf.mxu0
      %v565 = vadd.f32 %v286, %v564
      %v566 = vpop.f32.mrf.mxu0
      %v567 = vadd.f32 %v282, %v566
      %v568 = vpop.f32.mrf.mxu0
      %v569 = vadd.f32 %v286, %v568
      %570 = vmatprep.mubr.bf16.mxu0 0
      %571 = vmatmul.mubr.bf16.gmra.mxu0 %v484
      %v572 = vpop.f32.mrf.mxu0
      %v573 = vadd.f32 %v282, %v572
      %v574 = vpop.f32.mrf.mxu0
      %v575 = vadd.f32 %v286, %v574
      %v576 = vpop.f32.mrf.mxu0
      %v577 = vadd.f32 %v282, %v576
      %v578 = vpop.f32.mrf.mxu0
      %v579 = vadd.f32 %v286, %v578
      %580 = vmatprep.mubr.bf16.mxu0 0
      %581 = vmatmul.mubr.bf16.gmra.mxu0 %v487
      %v582 = vpop.f32.mrf.mxu0
      %v583 = vadd.f32 %v282, %v582
      %v584 = vpop.f32.mrf.mxu0
      %v585 = vadd.f32 %v286, %v584
      %v586 = vpop.f32.mrf.mxu0
      %v587 = vadd.f32 %v282, %v586
      %v588 = vpop.f32.mrf.mxu0
      %v589 = vadd.f32 %v286, %v588
      %590 = vmatprep.mubr.bf16.mxu0 0
      %591 = vmatmul.mubr.bf16.gmra.mxu0 %v490
      %v592 = vpop.f32.mrf.mxu0
      %v593 = vadd.f32 %v282, %v592
      %v594 = vpop.f32.mrf.mxu0
      %v595 = vadd.f32 %v286, %v594
      %v596 = vpop.f32.mrf.mxu0
      %v597 = vadd.f32 %v282, %v596
      %v598 = vpop.f32.mrf.mxu0
      %v599 = vadd.f32 %v286, %v598
      %600 = vmatprep.mubr.bf16.mxu0 0
      %601 = vmatmul.mubr.bf16.gmra.mxu0 %v493
      %v602 = vpop.f32.mrf.mxu0
      %v603 = vadd.f32 %v282, %v602
      %v604 = vpop.f32.mrf.mxu0
      %v605 = vadd.f32 %v286, %v604
      %v606 = vpop.f32.mrf.mxu0
      %v607 = vadd.f32 %v282, %v606
      %v608 = vpop.f32.mrf.mxu0
      %v609 = vadd.f32 %v286, %v608
      %610 = vmatprep.mubr.bf16.mxu0 0
      %611 = vmatmul.mubr.bf16.gmra.mxu0 %v496
      %v612 = vpop.f32.mrf.mxu0
      %v613 = vadd.f32 %v282, %v612
      %v614 = vpop.f32.mrf.mxu0
      %v615 = vadd.f32 %v286, %v614
      %v616 = vpop.f32.mrf.mxu0
      %v617 = vadd.f32 %v282, %v616
      %v618 = vpop.f32.mrf.mxu0
      %v619 = vadd.f32 %v286, %v618
      %620 = vmatprep.mubr.bf16.mxu0 0
      %621 = vmatmul.mubr.bf16.gmra.mxu0 %v499
      %v622 = vpop.f32.mrf.mxu0
      %v623 = vadd.f32 %v282, %v622
      %v624 = vpop.f32.mrf.mxu0
      %v625 = vadd.f32 %v286, %v624
      %v626 = vpop.f32.mrf.mxu0
      %v627 = vadd.f32 %v282, %v626
      %v628 = vpop.f32.mrf.mxu0
      %v629 = vadd.f32 %v286, %v628
      %630 = vmatprep.mubr.bf16.mxu0 0
      %631 = vmatmul.mubr.bf16.gmra.mxu0 %v502
      %v632 = vpop.f32.mrf.mxu0
      %v633 = vadd.f32 %v282, %v632
      %v634 = vpop.f32.mrf.mxu0
      %v635 = vadd.f32 %v286, %v634
      %v636 = vpop.f32.mrf.mxu0
      %v637 = vadd.f32 %v282, %v636
      %v638 = vpop.f32.mrf.mxu0
      %v639 = vadd.f32 %v286, %v638
      %640 = vmatprep.mubr.bf16.mxu0 0
      %641 = vmatmul.mubr.bf16.gmra.mxu0 %v505
      %v642 = vpop.f32.mrf.mxu0
      %v643 = vadd.f32 %v282, %v642
      %v644 = vpop.f32.mrf.mxu0
      %v645 = vadd.f32 %v286, %v644
      %v646 = vpop.f32.mrf.mxu0
      %v647 = vadd.f32 %v282, %v646
      %v648 = vpop.f32.mrf.mxu0
      %v649 = vadd.f32 %v286, %v648
      %650 = vmatprep.mubr.bf16.mxu0 0
      %651 = vmatmul.mubr.bf16.gmra.mxu0 %v508
      %v652 = vpop.f32.mrf.mxu0
      %v653 = vadd.f32 %v282, %v652
      %v654 = vpop.f32.mrf.mxu0
      %v655 = vadd.f32 %v286, %v654
      %v656 = vpop.f32.mrf.mxu0
      %v657 = vadd.f32 %v282, %v656
      %v658 = vpop.f32.mrf.mxu0
      %v659 = vadd.f32 %v286, %v658
      %660 = vmatprep.mubr.bf16.mxu0 0
      %661 = vmatmul.mubr.bf16.gmra.mxu0 %v511
      %v662 = vpop.f32.mrf.mxu0
      %v663 = vadd.f32 %v282, %v662
      %v664 = vpop.f32.mrf.mxu0
      %v665 = vadd.f32 %v286, %v664
      %v666 = vpop.f32.mrf.mxu0
      %v667 = vadd.f32 %v282, %v666
      %v668 = vpop.f32.mrf.mxu0
      %v669 = vadd.f32 %v286, %v668
      %670 = vmatprep.mubr.bf16.mxu0 0
      %671 = vmatmul.mubr.bf16.gmra.mxu0 %v514
      %v672 = vpop.f32.mrf.mxu0
      %v673 = vadd.f32 %v282, %v672
      %v674 = vpop.f32.mrf.mxu0
      %v675 = vadd.f32 %v286, %v674
      %v676 = vpop.f32.mrf.mxu0
      %v677 = vadd.f32 %v282, %v676
      %v678 = vpop.f32.mrf.mxu0
      %v679 = vadd.f32 %v286, %v678
      %680 = vmatprep.mubr.bf16.mxu0 0
      %681 = vmatmul.mubr.bf16.gmra.mxu0 %v517
      %v682 = vpop.f32.mrf.mxu0
      %v683 = vadd.f32 %v282, %v682
      %v684 = vpop.f32.mrf.mxu0
      %v685 = vadd.f32 %v286, %v684
      %v686 = vpop.f32.mrf.mxu0
      %v687 = vadd.f32 %v282, %v686
      %v688 = vpop.f32.mrf.mxu0
      %v689 = vadd.f32 %v286, %v688
      %690 = vmatprep.mubr.bf16.mxu0 0
      %691 = vmatmul.mubr.bf16.gmra.mxu0 %v520
      %v692 = vpop.f32.mrf.mxu0
      %v693 = vadd.f32 %v282, %v692
      %v694 = vpop.f32.mrf.mxu0
      %v695 = vadd.f32 %v286, %v694
      %v696 = vpop.f32.mrf.mxu0
      %v697 = vadd.f32 %v282, %v696
      %v698 = vpop.f32.mrf.mxu0
      %v699 = vadd.f32 %v286, %v698
      %700 = vmatprep.mubr.bf16.mxu0 0
      %701 = vmatmul.mubr.bf16.gmra.mxu0 %v523
      %v702 = vpop.f32.mrf.mxu0
      %v703 = vadd.f32 %v282, %v702
      %v704 = vpop.f32.mrf.mxu0
      %v705 = vadd.f32 %v286, %v704
      %v706 = vpop.f32.mrf.mxu0
      %v707 = vadd.f32 %v282, %v706
      %v708 = vpop.f32.mrf.mxu0
      %v709 = vadd.f32 %v286, %v708
      %710 = vmatprep.mubr.bf16.mxu0 0
      %711 = vmatmul.mubr.bf16.gmra.mxu0 %v526
      %v712 = vpop.f32.mrf.mxu0
      %v713 = vadd.f32 %v282, %v712
      %v714 = vpop.f32.mrf.mxu0
      %v715 = vadd.f32 %v286, %v714
      %v716 = vpop.f32.mrf.mxu0
      %v717 = vadd.f32 %v282, %v716
      %v718 = vpop.f32.mrf.mxu0
      %v719 = vadd.f32 %v286, %v718
      %720 = vdwg.mxu0
      %721 = vmatprep.subr.bf16.mxu0 0
      %722 = vmatpush1.bf16.msra.mxu0 0
      %723 = vmatprep.subr.bf16.mxu0 0
      %724 = vmatpush1.bf16.msra.mxu0 0
      %725 = vmatprep.subr.bf16.mxu0 0
      %726 = vmatpush1.bf16.msra.mxu0 0
      %727 = vmatprep.subr.bf16.mxu0 0
      %728 = vmatpush1.bf16.msra.mxu0 0
      %729 = vmatprep.subr.bf16.mxu0 0
      %730 = vmatpush1.bf16.msra.mxu0 0
      %731 = vmatprep.subr.bf16.mxu0 0
      %732 = vmatpush1.bf16.msra.mxu0 0
      %733 = vmatprep.subr.bf16.mxu0 %v458
      %734 = vmatpush1.bf16.msra.mxu0 %v457
      %735 = vmatprep.subr.bf16.mxu0 %v450
      %736 = vmatpush1.bf16.msra.mxu0 %v449
      %737 = vmatprep.subr.bf16.mxu0 0
      %738 = vmatpush2.bf16.msra.mxu0 0
      %739 = vmatprep.subr.bf16.mxu0 0
      %740 = vmatpush2.bf16.msra.mxu0 0
      %741 = vmatprep.subr.bf16.mxu0 0
      %742 = vmatpush2.bf16.msra.mxu0 0
      %743 = vmatprep.subr.bf16.mxu0 0
      %744 = vmatpush2.bf16.msra.mxu0 0
      %745 = vmatprep.subr.bf16.mxu0 0
      %746 = vmatpush2.bf16.msra.mxu0 0
      %747 = vmatprep.subr.bf16.mxu0 0
      %748 = vmatpush2.bf16.msra.mxu0 0
      %749 = vmatprep.subr.bf16.mxu0 0
      %750 = vmatpush2.bf16.msra.mxu0 0
      %751 = vmatprep.subr.bf16.mxu0 0
      %752 = vmatpush2.bf16.msra.mxu0 0
      %753 = vmatprep.mubr.bf16.mxu0 0
      %754 = vmatmul.mubr.bf16.gmra.mxu0 %v481
      %v755 = vpop.f32.mrf.mxu0
      %v756 = vadd.f32 %v290, %v755
      %v757 = vpop.f32.mrf.mxu0
      %v758 = vadd.f32 %v294, %v757
      %v759 = vpop.f32.mrf.mxu0
      %v760 = vadd.f32 %v290, %v759
      %v761 = vpop.f32.mrf.mxu0
      %v762 = vadd.f32 %v294, %v761
      %763 = vmatprep.mubr.bf16.mxu0 0
      %764 = vmatmul.mubr.bf16.gmra.mxu0 %v484
      %v765 = vpop.f32.mrf.mxu0
      %v766 = vadd.f32 %v290, %v765
      %v767 = vpop.f32.mrf.mxu0
      %v768 = vadd.f32 %v294, %v767
      %v769 = vpop.f32.mrf.mxu0
      %v770 = vadd.f32 %v290, %v769
      %v771 = vpop.f32.mrf.mxu0
      %v772 = vadd.f32 %v294, %v771
      %773 = vmatprep.mubr.bf16.mxu0 0
      %774 = vmatmul.mubr.bf16.gmra.mxu0 %v487
      %v775 = vpop.f32.mrf.mxu0
      %v776 = vadd.f32 %v290, %v775
      %v777 = vpop.f32.mrf.mxu0
      %v778 = vadd.f32 %v294, %v777
      %v779 = vpop.f32.mrf.mxu0
      %v780 = vadd.f32 %v290, %v779
      %v781 = vpop.f32.mrf.mxu0
      %v782 = vadd.f32 %v294, %v781
      %783 = vmatprep.mubr.bf16.mxu0 0
      %784 = vmatmul.mubr.bf16.gmra.mxu0 %v490
      %v785 = vpop.f32.mrf.mxu0
      %v786 = vadd.f32 %v290, %v785
      %v787 = vpop.f32.mrf.mxu0
      %v788 = vadd.f32 %v294, %v787
      %v789 = vpop.f32.mrf.mxu0
      %v790 = vadd.f32 %v290, %v789
      %v791 = vpop.f32.mrf.mxu0
      %v792 = vadd.f32 %v294, %v791
      %793 = vmatprep.mubr.bf16.mxu0 0
      %794 = vmatmul.mubr.bf16.gmra.mxu0 %v493
      %v795 = vpop.f32.mrf.mxu0
      %v796 = vadd.f32 %v290, %v795
      %v797 = vpop.f32.mrf.mxu0
      %v798 = vadd.f32 %v294, %v797
      %v799 = vpop.f32.mrf.mxu0
      %v800 = vadd.f32 %v290, %v799
      %v801 = vpop.f32.mrf.mxu0
      %v802 = vadd.f32 %v294, %v801
      %803 = vmatprep.mubr.bf16.mxu0 0
      %804 = vmatmul.mubr.bf16.gmra.mxu0 %v496
      %v805 = vpop.f32.mrf.mxu0
      %v806 = vadd.f32 %v290, %v805
      %v807 = vpop.f32.mrf.mxu0
      %v808 = vadd.f32 %v294, %v807
      %v809 = vpop.f32.mrf.mxu0
      %v810 = vadd.f32 %v290, %v809
      %v811 = vpop.f32.mrf.mxu0
      %v812 = vadd.f32 %v294, %v811
      %813 = vmatprep.mubr.bf16.mxu0 0
      %814 = vmatmul.mubr.bf16.gmra.mxu0 %v499
      %v815 = vpop.f32.mrf.mxu0
      %v816 = vadd.f32 %v290, %v815
      %v817 = vpop.f32.mrf.mxu0
      %v818 = vadd.f32 %v294, %v817
      %v819 = vpop.f32.mrf.mxu0
      %v820 = vadd.f32 %v290, %v819
      %v821 = vpop.f32.mrf.mxu0
      %v822 = vadd.f32 %v294, %v821
      %823 = vmatprep.mubr.bf16.mxu0 0
      %824 = vmatmul.mubr.bf16.gmra.mxu0 %v502
      %v825 = vpop.f32.mrf.mxu0
      %v826 = vadd.f32 %v290, %v825
      %v827 = vpop.f32.mrf.mxu0
      %v828 = vadd.f32 %v294, %v827
      %v829 = vpop.f32.mrf.mxu0
      %v830 = vadd.f32 %v290, %v829
      %v831 = vpop.f32.mrf.mxu0
      %v832 = vadd.f32 %v294, %v831
      %833 = vmatprep.mubr.bf16.mxu0 0
      %834 = vmatmul.mubr.bf16.gmra.mxu0 %v505
      %v835 = vpop.f32.mrf.mxu0
      %v836 = vadd.f32 %v290, %v835
      %v837 = vpop.f32.mrf.mxu0
      %v838 = vadd.f32 %v294, %v837
      %v839 = vpop.f32.mrf.mxu0
      %v840 = vadd.f32 %v290, %v839
      %v841 = vpop.f32.mrf.mxu0
      %v842 = vadd.f32 %v294, %v841
      %843 = vmatprep.mubr.bf16.mxu0 0
      %844 = vmatmul.mubr.bf16.gmra.mxu0 %v508
      %v845 = vpop.f32.mrf.mxu0
      %v846 = vadd.f32 %v290, %v845
      %v847 = vpop.f32.mrf.mxu0
      %v848 = vadd.f32 %v294, %v847
      %v849 = vpop.f32.mrf.mxu0
      %v850 = vadd.f32 %v290, %v849
      %v851 = vpop.f32.mrf.mxu0
      %v852 = vadd.f32 %v294, %v851
      %853 = vmatprep.mubr.bf16.mxu0 0
      %854 = vmatmul.mubr.bf16.gmra.mxu0 %v511
      %v855 = vpop.f32.mrf.mxu0
      %v856 = vadd.f32 %v290, %v855
      %v857 = vpop.f32.mrf.mxu0
      %v858 = vadd.f32 %v294, %v857
      %v859 = vpop.f32.mrf.mxu0
      %v860 = vadd.f32 %v290, %v859
      %v861 = vpop.f32.mrf.mxu0
      %v862 = vadd.f32 %v294, %v861
      %863 = vmatprep.mubr.bf16.mxu0 0
      %864 = vmatmul.mubr.bf16.gmra.mxu0 %v514
      %v865 = vpop.f32.mrf.mxu0
      %v866 = vadd.f32 %v290, %v865
      %v867 = vpop.f32.mrf.mxu0
      %v868 = vadd.f32 %v294, %v867
      %v869 = vpop.f32.mrf.mxu0
      %v870 = vadd.f32 %v290, %v869
      %v871 = vpop.f32.mrf.mxu0
      %v872 = vadd.f32 %v294, %v871
      %873 = vmatprep.mubr.bf16.mxu0 0
      %874 = vmatmul.mubr.bf16.gmra.mxu0 %v517
      %v875 = vpop.f32.mrf.mxu0
      %v876 = vadd.f32 %v290, %v875
      %v877 = vpop.f32.mrf.mxu0
      %v878 = vadd.f32 %v294, %v877
      %v879 = vpop.f32.mrf.mxu0
      %v880 = vadd.f32 %v290, %v879
      %v881 = vpop.f32.mrf.mxu0
      %v882 = vadd.f32 %v294, %v881
      %883 = vmatprep.mubr.bf16.mxu0 0
      %884 = vmatmul.mubr.bf16.gmra.mxu0 %v520
      %v885 = vpop.f32.mrf.mxu0
      %v886 = vadd.f32 %v290, %v885
      %v887 = vpop.f32.mrf.mxu0
      %v888 = vadd.f32 %v294, %v887
      %v889 = vpop.f32.mrf.mxu0
      %v890 = vadd.f32 %v290, %v889
      %v891 = vpop.f32.mrf.mxu0
      %v892 = vadd.f32 %v294, %v891
      %893 = vmatprep.mubr.bf16.mxu0 0
      %894 = vmatmul.mubr.bf16.gmra.mxu0 %v523
      %v895 = vpop.f32.mrf.mxu0
      %v896 = vadd.f32 %v290, %v895
      %v897 = vpop.f32.mrf.mxu0
      %v898 = vadd.f32 %v294, %v897
      %v899 = vpop.f32.mrf.mxu0
      %v900 = vadd.f32 %v290, %v899
      %v901 = vpop.f32.mrf.mxu0
      %v902 = vadd.f32 %v294, %v901
      %903 = vmatprep.mubr.bf16.mxu0 0
      %904 = vmatmul.mubr.bf16.gmra.mxu0 %v526
      %v905 = vpop.f32.mrf.mxu0
      %v906 = vadd.f32 %v290, %v905
      %v907 = vpop.f32.mrf.mxu0
      %v908 = vadd.f32 %v294, %v907
      %v909 = vpop.f32.mrf.mxu0
      %v910 = vadd.f32 %v290, %v909
      %v911 = vpop.f32.mrf.mxu0
      %v912 = vadd.f32 %v294, %v911
      %913 = vdwg.mxu0
      %914 = vmatprep.subr.bf16.mxu0 0
      %915 = vmatpush1.bf16.msra.mxu0 0
      %916 = vmatprep.subr.bf16.mxu0 0
      %917 = vmatpush1.bf16.msra.mxu0 0
      %918 = vmatprep.subr.bf16.mxu0 0
      %919 = vmatpush1.bf16.msra.mxu0 0
      %920 = vmatprep.subr.bf16.mxu0 0
      %921 = vmatpush1.bf16.msra.mxu0 0
      %922 = vmatprep.subr.bf16.mxu0 0
      %923 = vmatpush1.bf16.msra.mxu0 0
      %924 = vmatprep.subr.bf16.mxu0 0
      %925 = vmatpush1.bf16.msra.mxu0 0
      %926 = vmatprep.subr.bf16.mxu0 %v460
      %927 = vmatpush1.bf16.msra.mxu0 %v459
      %928 = vmatprep.subr.bf16.mxu0 %v452
      %929 = vmatpush1.bf16.msra.mxu0 %v451
      %930 = vmatprep.subr.bf16.mxu0 0
      %931 = vmatpush2.bf16.msra.mxu0 0
      %932 = vmatprep.subr.bf16.mxu0 0
      %933 = vmatpush2.bf16.msra.mxu0 0
      %934 = vmatprep.subr.bf16.mxu0 0
      %935 = vmatpush2.bf16.msra.mxu0 0
      %936 = vmatprep.subr.bf16.mxu0 0
      %937 = vmatpush2.bf16.msra.mxu0 0
      %938 = vmatprep.subr.bf16.mxu0 0
      %939 = vmatpush2.bf16.msra.mxu0 0
      %940 = vmatprep.subr.bf16.mxu0 0
      %941 = vmatpush2.bf16.msra.mxu0 0
      %942 = vmatprep.subr.bf16.mxu0 0
      %943 = vmatpush2.bf16.msra.mxu0 0
      %944 = vmatprep.subr.bf16.mxu0 0
      %945 = vmatpush2.bf16.msra.mxu0 0
      %946 = vmatprep.mubr.bf16.mxu0 0
      %947 = vmatmul.mubr.bf16.gmra.mxu0 %v481
      %v948 = vpop.f32.mrf.mxu0
      %v949 = vadd.f32 %v298, %v948
      %v950 = vpop.f32.mrf.mxu0
      %v951 = vadd.f32 %v302, %v950
      %v952 = vpop.f32.mrf.mxu0
      %v953 = vadd.f32 %v298, %v952
      %v954 = vpop.f32.mrf.mxu0
      %v955 = vadd.f32 %v302, %v954
      %956 = vmatprep.mubr.bf16.mxu0 0
      %957 = vmatmul.mubr.bf16.gmra.mxu0 %v484
      %v958 = vpop.f32.mrf.mxu0
      %v959 = vadd.f32 %v298, %v958
      %v960 = vpop.f32.mrf.mxu0
      %v961 = vadd.f32 %v302, %v960
      %v962 = vpop.f32.mrf.mxu0
      %v963 = vadd.f32 %v298, %v962
      %v964 = vpop.f32.mrf.mxu0
      %v965 = vadd.f32 %v302, %v964
      %966 = vmatprep.mubr.bf16.mxu0 0
      %967 = vmatmul.mubr.bf16.gmra.mxu0 %v487
      %v968 = vpop.f32.mrf.mxu0
      %v969 = vadd.f32 %v298, %v968
      %v970 = vpop.f32.mrf.mxu0
      %v971 = vadd.f32 %v302, %v970
      %v972 = vpop.f32.mrf.mxu0
      %v973 = vadd.f32 %v298, %v972
      %v974 = vpop.f32.mrf.mxu0
      %v975 = vadd.f32 %v302, %v974
      %976 = vmatprep.mubr.bf16.mxu0 0
      %977 = vmatmul.mubr.bf16.gmra.mxu0 %v490
      %v978 = vpop.f32.mrf.mxu0
      %v979 = vadd.f32 %v298, %v978
      %v980 = vpop.f32.mrf.mxu0
      %v981 = vadd.f32 %v302, %v980
      %v982 = vpop.f32.mrf.mxu0
      %v983 = vadd.f32 %v298, %v982
      %v984 = vpop.f32.mrf.mxu0
      %v985 = vadd.f32 %v302, %v984
      %986 = vmatprep.mubr.bf16.mxu0 0
      %987 = vmatmul.mubr.bf16.gmra.mxu0 %v493
      %v988 = vpop.f32.mrf.mxu0
      %v989 = vadd.f32 %v298, %v988
      %v990 = vpop.f32.mrf.mxu0
      %v991 = vadd.f32 %v302, %v990
      %v992 = vpop.f32.mrf.mxu0
      %v993 = vadd.f32 %v298, %v992
      %v994 = vpop.f32.mrf.mxu0
      %v995 = vadd.f32 %v302, %v994
      %996 = vmatprep.mubr.bf16.mxu0 0
      %997 = vmatmul.mubr.bf16.gmra.mxu0 %v496
      %v998 = vpop.f32.mrf.mxu0
      %v999 = vadd.f32 %v298, %v998
      %v1000 = vpop.f32.mrf.mxu0
      %v1001 = vadd.f32 %v302, %v1000
      %v1002 = vpop.f32.mrf.mxu0
      %v1003 = vadd.f32 %v298, %v1002
      %v1004 = vpop.f32.mrf.mxu0
      %v1005 = vadd.f32 %v302, %v1004
      %1006 = vmatprep.mubr.bf16.mxu0 0
      %1007 = vmatmul.mubr.bf16.gmra.mxu0 %v499
      %v1008 = vpop.f32.mrf.mxu0
      %v1009 = vadd.f32 %v298, %v1008
      %v1010 = vpop.f32.mrf.mxu0
      %v1011 = vadd.f32 %v302, %v1010
      %v1012 = vpop.f32.mrf.mxu0
      %v1013 = vadd.f32 %v298, %v1012
      %v1014 = vpop.f32.mrf.mxu0
      %v1015 = vadd.f32 %v302, %v1014
      %1016 = vmatprep.mubr.bf16.mxu0 0
      %1017 = vmatmul.mubr.bf16.gmra.mxu0 %v502
      %v1018 = vpop.f32.mrf.mxu0
      %v1019 = vadd.f32 %v298, %v1018
      %v1020 = vpop.f32.mrf.mxu0
      %v1021 = vadd.f32 %v302, %v1020
      %v1022 = vpop.f32.mrf.mxu0
      %v1023 = vadd.f32 %v298, %v1022
      %v1024 = vpop.f32.mrf.mxu0
      %v1025 = vadd.f32 %v302, %v1024
      %1026 = vmatprep.mubr.bf16.mxu0 0
      %1027 = vmatmul.mubr.bf16.gmra.mxu0 %v505
      %v1028 = vpop.f32.mrf.mxu0
      %v1029 = vadd.f32 %v298, %v1028
      %v1030 = vpop.f32.mrf.mxu0
      %v1031 = vadd.f32 %v302, %v1030
      %v1032 = vpop.f32.mrf.mxu0
      %v1033 = vadd.f32 %v298, %v1032
      %v1034 = vpop.f32.mrf.mxu0
      %v1035 = vadd.f32 %v302, %v1034
      %1036 = vmatprep.mubr.bf16.mxu0 0
      %1037 = vmatmul.mubr.bf16.gmra.mxu0 %v508
      %v1038 = vpop.f32.mrf.mxu0
      %v1039 = vadd.f32 %v298, %v1038
      %v1040 = vpop.f32.mrf.mxu0
      %v1041 = vadd.f32 %v302, %v1040
      %v1042 = vpop.f32.mrf.mxu0
      %v1043 = vadd.f32 %v298, %v1042
      %v1044 = vpop.f32.mrf.mxu0
      %v1045 = vadd.f32 %v302, %v1044
      %1046 = vmatprep.mubr.bf16.mxu0 0
      %1047 = vmatmul.mubr.bf16.gmra.mxu0 %v511
      %v1048 = vpop.f32.mrf.mxu0
      %v1049 = vadd.f32 %v298, %v1048
      %v1050 = vpop.f32.mrf.mxu0
      %v1051 = vadd.f32 %v302, %v1050
      %v1052 = vpop.f32.mrf.mxu0
      %v1053 = vadd.f32 %v298, %v1052
      %v1054 = vpop.f32.mrf.mxu0
      %v1055 = vadd.f32 %v302, %v1054
      %1056 = vmatprep.mubr.bf16.mxu0 0
      %1057 = vmatmul.mubr.bf16.gmra.mxu0 %v514
      %v1058 = vpop.f32.mrf.mxu0
      %v1059 = vadd.f32 %v298, %v1058
      %v1060 = vpop.f32.mrf.mxu0
      %v1061 = vadd.f32 %v302, %v1060
      %v1062 = vpop.f32.mrf.mxu0
      %v1063 = vadd.f32 %v298, %v1062
      %v1064 = vpop.f32.mrf.mxu0
      %v1065 = vadd.f32 %v302, %v1064
      %1066 = vmatprep.mubr.bf16.mxu0 0
      %1067 = vmatmul.mubr.bf16.gmra.mxu0 %v517
      %v1068 = vpop.f32.mrf.mxu0
      %v1069 = vadd.f32 %v298, %v1068
      %v1070 = vpop.f32.mrf.mxu0
      %v1071 = vadd.f32 %v302, %v1070
      %v1072 = vpop.f32.mrf.mxu0
      %v1073 = vadd.f32 %v298, %v1072
      %v1074 = vpop.f32.mrf.mxu0
      %v1075 = vadd.f32 %v302, %v1074
      %1076 = vmatprep.mubr.bf16.mxu0 0
      %1077 = vmatmul.mubr.bf16.gmra.mxu0 %v520
      %v1078 = vpop.f32.mrf.mxu0
      %v1079 = vadd.f32 %v298, %v1078
      %v1080 = vpop.f32.mrf.mxu0
      %v1081 = vadd.f32 %v302, %v1080
      %v1082 = vpop.f32.mrf.mxu0
      %v1083 = vadd.f32 %v298, %v1082
      %v1084 = vpop.f32.mrf.mxu0
      %v1085 = vadd.f32 %v302, %v1084
      %1086 = vmatprep.mubr.bf16.mxu0 0
      %1087 = vmatmul.mubr.bf16.gmra.mxu0 %v523
      %v1088 = vpop.f32.mrf.mxu0
      %v1089 = vadd.f32 %v298, %v1088
      %v1090 = vpop.f32.mrf.mxu0
      %v1091 = vadd.f32 %v302, %v1090
      %v1092 = vpop.f32.mrf.mxu0
      %v1093 = vadd.f32 %v298, %v1092
      %v1094 = vpop.f32.mrf.mxu0
      %v1095 = vadd.f32 %v302, %v1094
      %1096 = vmatprep.mubr.bf16.mxu0 0
      %1097 = vmatmul.mubr.bf16.gmra.mxu0 %v526
      %v1098 = vpop.f32.mrf.mxu0
      %v1099 = vadd.f32 %v298, %v1098
      %v1100 = vpop.f32.mrf.mxu0
      %v1101 = vadd.f32 %v302, %v1100
      %v1102 = vpop.f32.mrf.mxu0
      %v1103 = vadd.f32 %v298, %v1102
      %v1104 = vpop.f32.mrf.mxu0
      %v1105 = vadd.f32 %v302, %v1104
      %1106 = vdwg.mxu0
      %1107 = vmatprep.subr.bf16.mxu0 0
      %1108 = vmatpush1.bf16.msra.mxu0 0
      %1109 = vmatprep.subr.bf16.mxu0 0
      %1110 = vmatpush1.bf16.msra.mxu0 0
      %1111 = vmatprep.subr.bf16.mxu0 0
      %1112 = vmatpush1.bf16.msra.mxu0 0
      %1113 = vmatprep.subr.bf16.mxu0 0
      %1114 = vmatpush1.bf16.msra.mxu0 0
      %1115 = vmatprep.subr.bf16.mxu0 0
      %1116 = vmatpush1.bf16.msra.mxu0 0
      %1117 = vmatprep.subr.bf16.mxu0 0
      %1118 = vmatpush1.bf16.msra.mxu0 0
      %1119 = vmatprep.subr.bf16.mxu0 %v462
      %1120 = vmatpush1.bf16.msra.mxu0 %v461
      %1121 = vmatprep.subr.bf16.mxu0 %v454
      %1122 = vmatpush1.bf16.msra.mxu0 %v453
      %1123 = vmatprep.subr.bf16.mxu0 0
      %1124 = vmatpush2.bf16.msra.mxu0 0
      %1125 = vmatprep.subr.bf16.mxu0 0
      %1126 = vmatpush2.bf16.msra.mxu0 0
      %1127 = vmatprep.subr.bf16.mxu0 0
      %1128 = vmatpush2.bf16.msra.mxu0 0
      %1129 = vmatprep.subr.bf16.mxu0 0
      %1130 = vmatpush2.bf16.msra.mxu0 0
      %1131 = vmatprep.subr.bf16.mxu0 0
      %1132 = vmatpush2.bf16.msra.mxu0 0
      %1133 = vmatprep.subr.bf16.mxu0 0
      %1134 = vmatpush2.bf16.msra.mxu0 0
      %1135 = vmatprep.subr.bf16.mxu0 0
      %1136 = vmatpush2.bf16.msra.mxu0 0
      %1137 = vmatprep.subr.bf16.mxu0 0
      %1138 = vmatpush2.bf16.msra.mxu0 0
      %1139 = vmatprep.mubr.bf16.mxu0 0
      %1140 = vmatmul.mubr.bf16.gmra.mxu0 %v481
      %v1141 = vpop.f32.mrf.mxu0
      %v1142 = vadd.f32 %v306, %v1141
      %v1143 = vpop.f32.mrf.mxu0
      %v1144 = vadd.f32 %v310, %v1143
      %v1145 = vpop.f32.mrf.mxu0
      %v1146 = vadd.f32 %v306, %v1145
      %v1147 = vpop.f32.mrf.mxu0
      %v1148 = vadd.f32 %v310, %v1147
      %1149 = vmatprep.mubr.bf16.mxu0 0
      %1150 = vmatmul.mubr.bf16.gmra.mxu0 %v484
      %v1151 = vpop.f32.mrf.mxu0
      %v1152 = vadd.f32 %v306, %v1151
      %v1153 = vpop.f32.mrf.mxu0
      %v1154 = vadd.f32 %v310, %v1153
      %v1155 = vpop.f32.mrf.mxu0
      %v1156 = vadd.f32 %v306, %v1155
      %v1157 = vpop.f32.mrf.mxu0
      %v1158 = vadd.f32 %v310, %v1157
      %1159 = vmatprep.mubr.bf16.mxu0 0
      %1160 = vmatmul.mubr.bf16.gmra.mxu0 %v487
      %v1161 = vpop.f32.mrf.mxu0
      %v1162 = vadd.f32 %v306, %v1161
      %v1163 = vpop.f32.mrf.mxu0
      %v1164 = vadd.f32 %v310, %v1163
      %v1165 = vpop.f32.mrf.mxu0
      %v1166 = vadd.f32 %v306, %v1165
      %v1167 = vpop.f32.mrf.mxu0
      %v1168 = vadd.f32 %v310, %v1167
      %1169 = vmatprep.mubr.bf16.mxu0 0
      %1170 = vmatmul.mubr.bf16.gmra.mxu0 %v490
      %v1171 = vpop.f32.mrf.mxu0
      %v1172 = vadd.f32 %v306, %v1171
      %v1173 = vpop.f32.mrf.mxu0
      %v1174 = vadd.f32 %v310, %v1173
      %v1175 = vpop.f32.mrf.mxu0
      %v1176 = vadd.f32 %v306, %v1175
      %v1177 = vpop.f32.mrf.mxu0
      %v1178 = vadd.f32 %v310, %v1177
      %1179 = vmatprep.mubr.bf16.mxu0 0
      %1180 = vmatmul.mubr.bf16.gmra.mxu0 %v493
      %v1181 = vpop.f32.mrf.mxu0
      %v1182 = vadd.f32 %v306, %v1181
      %v1183 = vpop.f32.mrf.mxu0
      %v1184 = vadd.f32 %v310, %v1183
      %v1185 = vpop.f32.mrf.mxu0
      %v1186 = vadd.f32 %v306, %v1185
      %v1187 = vpop.f32.mrf.mxu0
      %v1188 = vadd.f32 %v310, %v1187
      %1189 = vmatprep.mubr.bf16.mxu0 0
      %1190 = vmatmul.mubr.bf16.gmra.mxu0 %v496
      %v1191 = vpop.f32.mrf.mxu0
      %v1192 = vadd.f32 %v306, %v1191
      %v1193 = vpop.f32.mrf.mxu0
      %v1194 = vadd.f32 %v310, %v1193
      %v1195 = vpop.f32.mrf.mxu0
      %v1196 = vadd.f32 %v306, %v1195
      %v1197 = vpop.f32.mrf.mxu0
      %v1198 = vadd.f32 %v310, %v1197
      %1199 = vmatprep.mubr.bf16.mxu0 0
      %1200 = vmatmul.mubr.bf16.gmra.mxu0 %v499
      %v1201 = vpop.f32.mrf.mxu0
      %v1202 = vadd.f32 %v306, %v1201
      %v1203 = vpop.f32.mrf.mxu0
      %v1204 = vadd.f32 %v310, %v1203
      %v1205 = vpop.f32.mrf.mxu0
      %v1206 = vadd.f32 %v306, %v1205
      %v1207 = vpop.f32.mrf.mxu0
      %v1208 = vadd.f32 %v310, %v1207
      %1209 = vmatprep.mubr.bf16.mxu0 0
      %1210 = vmatmul.mubr.bf16.gmra.mxu0 %v502
      %v1211 = vpop.f32.mrf.mxu0
      %v1212 = vadd.f32 %v306, %v1211
      %v1213 = vpop.f32.mrf.mxu0
      %v1214 = vadd.f32 %v310, %v1213
      %v1215 = vpop.f32.mrf.mxu0
      %v1216 = vadd.f32 %v306, %v1215
      %v1217 = vpop.f32.mrf.mxu0
      %v1218 = vadd.f32 %v310, %v1217
      %1219 = vmatprep.mubr.bf16.mxu0 0
      %1220 = vmatmul.mubr.bf16.gmra.mxu0 %v505
      %v1221 = vpop.f32.mrf.mxu0
      %v1222 = vadd.f32 %v306, %v1221
      %v1223 = vpop.f32.mrf.mxu0
      %v1224 = vadd.f32 %v310, %v1223
      %v1225 = vpop.f32.mrf.mxu0
      %v1226 = vadd.f32 %v306, %v1225
      %v1227 = vpop.f32.mrf.mxu0
      %v1228 = vadd.f32 %v310, %v1227
      %1229 = vmatprep.mubr.bf16.mxu0 0
      %1230 = vmatmul.mubr.bf16.gmra.mxu0 %v508
      %v1231 = vpop.f32.mrf.mxu0
      %v1232 = vadd.f32 %v306, %v1231
      %v1233 = vpop.f32.mrf.mxu0
      %v1234 = vadd.f32 %v310, %v1233
      %v1235 = vpop.f32.mrf.mxu0
      %v1236 = vadd.f32 %v306, %v1235
      %v1237 = vpop.f32.mrf.mxu0
      %v1238 = vadd.f32 %v310, %v1237
      %1239 = vmatprep.mubr.bf16.mxu0 0
      %1240 = vmatmul.mubr.bf16.gmra.mxu0 %v511
      %v1241 = vpop.f32.mrf.mxu0
      %v1242 = vadd.f32 %v306, %v1241
      %v1243 = vpop.f32.mrf.mxu0
      %v1244 = vadd.f32 %v310, %v1243
      %v1245 = vpop.f32.mrf.mxu0
      %v1246 = vadd.f32 %v306, %v1245
      %v1247 = vpop.f32.mrf.mxu0
      %v1248 = vadd.f32 %v310, %v1247
      %1249 = vmatprep.mubr.bf16.mxu0 0
      %1250 = vmatmul.mubr.bf16.gmra.mxu0 %v514
      %v1251 = vpop.f32.mrf.mxu0
      %v1252 = vadd.f32 %v306, %v1251
      %v1253 = vpop.f32.mrf.mxu0
      %v1254 = vadd.f32 %v310, %v1253
      %v1255 = vpop.f32.mrf.mxu0
      %v1256 = vadd.f32 %v306, %v1255
      %v1257 = vpop.f32.mrf.mxu0
      %v1258 = vadd.f32 %v310, %v1257
      %1259 = vmatprep.mubr.bf16.mxu0 0
      %1260 = vmatmul.mubr.bf16.gmra.mxu0 %v517
      %v1261 = vpop.f32.mrf.mxu0
      %v1262 = vadd.f32 %v306, %v1261
      %v1263 = vpop.f32.mrf.mxu0
      %v1264 = vadd.f32 %v310, %v1263
      %v1265 = vpop.f32.mrf.mxu0
      %v1266 = vadd.f32 %v306, %v1265
      %v1267 = vpop.f32.mrf.mxu0
      %v1268 = vadd.f32 %v310, %v1267
      %1269 = vmatprep.mubr.bf16.mxu0 0
      %1270 = vmatmul.mubr.bf16.gmra.mxu0 %v520
      %v1271 = vpop.f32.mrf.mxu0
      %v1272 = vadd.f32 %v306, %v1271
      %v1273 = vpop.f32.mrf.mxu0
      %v1274 = vadd.f32 %v310, %v1273
      %v1275 = vpop.f32.mrf.mxu0
      %v1276 = vadd.f32 %v306, %v1275
      %v1277 = vpop.f32.mrf.mxu0
      %v1278 = vadd.f32 %v310, %v1277
      %1279 = vmatprep.mubr.bf16.mxu0 0
      %1280 = vmatmul.mubr.bf16.gmra.mxu0 %v523
      %v1281 = vpop.f32.mrf.mxu0
      %v1282 = vadd.f32 %v306, %v1281
      %v1283 = vpop.f32.mrf.mxu0
      %v1284 = vadd.f32 %v310, %v1283
      %v1285 = vpop.f32.mrf.mxu0
      %v1286 = vadd.f32 %v306, %v1285
      %v1287 = vpop.f32.mrf.mxu0
      %v1288 = vadd.f32 %v310, %v1287
      %1289 = vmatprep.mubr.bf16.mxu0 0
      %1290 = vmatmul.mubr.bf16.gmra.mxu0 %v526
      %v1291 = vpop.f32.mrf.mxu0
      %v1292 = vadd.f32 %v306, %v1291
      %v1293 = vpop.f32.mrf.mxu0
      %v1294 = vadd.f32 %v310, %v1293
      %v1295 = vpop.f32.mrf.mxu0
      %v1296 = vadd.f32 %v306, %v1295
      %v1297 = vpop.f32.mrf.mxu0
      %v1298 = vadd.f32 %v310, %v1297
      %1299 = vdwg.mxu0
      %v1300 = vtanh.pop %v563
      %v1301 = vtanh.pop %v565
      %v1302 = vtanh.pop %v756
      %v1303 = vtanh.pop %v758
      %v1304 = vtanh.pop %v949
      %v1305 = vtanh.pop %v951
      %v1306 = vtanh.pop %v1142
      %v1307 = vtanh.pop %v1144
      %v1308 = vtanh.pop %v567
      %v1309 = vtanh.pop %v569
      %v1310 = vtanh.pop %v760
      %v1311 = vtanh.pop %v762
      %v1312 = vtanh.pop %v953
      %v1313 = vtanh.pop %v955
      %v1314 = vtanh.pop %v1146
      %v1315 = vtanh.pop %v1148
      %v1316 = vtanh.pop %v573
      %v1317 = vtanh.pop %v575
      %v1318 = vtanh.pop %v766
      %v1319 = vtanh.pop %v768
      %v1320 = vtanh.pop %v959
      %v1321 = vtanh.pop %v961
      %v1322 = vtanh.pop %v1152
      %v1323 = vtanh.pop %v1154
      %v1324 = vtanh.pop %v577
      %v1325 = vtanh.pop %v579
      %v1326 = vtanh.pop %v770
      %v1327 = vtanh.pop %v772
      %v1328 = vtanh.pop %v963
      %v1329 = vtanh.pop %v965
      %v1330 = vtanh.pop %v1156
      %v1331 = vtanh.pop %v1158
      %v1332 = vtanh.pop %v583
      %v1333 = vtanh.pop %v585
      %v1334 = vtanh.pop %v776
      %v1335 = vtanh.pop %v778
      %v1336 = vtanh.pop %v969
      %v1337 = vtanh.pop %v971
      %v1338 = vtanh.pop %v1162
      %v1339 = vtanh.pop %v1164
      %v1340 = vtanh.pop %v587
      %v1341 = vtanh.pop %v589
      %v1342 = vtanh.pop %v780
      %v1343 = vtanh.pop %v782
      %v1344 = vtanh.pop %v973
      %v1345 = vtanh.pop %v975
      %v1346 = vtanh.pop %v1166
      %v1347 = vtanh.pop %v1168
      %v1348 = vtanh.pop %v593
      %v1349 = vtanh.pop %v595
      %v1350 = vtanh.pop %v786
      %v1351 = vtanh.pop %v788
      %v1352 = vtanh.pop %v979
      %v1353 = vtanh.pop %v981
      %v1354 = vtanh.pop %v1172
      %v1355 = vtanh.pop %v1174
      %v1356 = vtanh.pop %v597
      %v1357 = vtanh.pop %v599
      %v1358 = vtanh.pop %v790
      %v1359 = vtanh.pop %v792
      %v1360 = vtanh.pop %v983
      %v1361 = vtanh.pop %v985
      %v1362 = vtanh.pop %v1176
      %v1363 = vtanh.pop %v1178
      %v1364 = vtanh.pop %v603
      %v1365 = vtanh.pop %v605
      %v1366 = vtanh.pop %v796
      %v1367 = vtanh.pop %v798
      %v1368 = vtanh.pop %v989
      %v1369 = vtanh.pop %v991
      %v1370 = vtanh.pop %v1182
      %v1371 = vtanh.pop %v1184
      %v1372 = vtanh.pop %v607
      %v1373 = vtanh.pop %v609
      %v1374 = vtanh.pop %v800
      %v1375 = vtanh.pop %v802
      %v1376 = vtanh.pop %v993
      %v1377 = vtanh.pop %v995
      %v1378 = vtanh.pop %v1186
      %v1379 = vtanh.pop %v1188
      %v1380 = vtanh.pop %v613
      %v1381 = vtanh.pop %v615
      %v1382 = vtanh.pop %v806
      %v1383 = vtanh.pop %v808
      %v1384 = vtanh.pop %v999
      %v1385 = vtanh.pop %v1001
      %v1386 = vtanh.pop %v1192
      %v1387 = vtanh.pop %v1194
      %v1388 = vtanh.pop %v617
      %v1389 = vtanh.pop %v619
      %v1390 = vtanh.pop %v810
      %v1391 = vtanh.pop %v812
      %v1392 = vtanh.pop %v1003
      %v1393 = vtanh.pop %v1005
      %v1394 = vtanh.pop %v1196
      %v1395 = vtanh.pop %v1198
      %v1396 = vtanh.pop %v623
      %v1397 = vtanh.pop %v625
      %v1398 = vtanh.pop %v816
      %v1399 = vtanh.pop %v818
      %v1400 = vtanh.pop %v1009
      %v1401 = vtanh.pop %v1011
      %v1402 = vtanh.pop %v1202
      %v1403 = vtanh.pop %v1204
      %v1404 = vtanh.pop %v627
      %v1405 = vtanh.pop %v629
      %v1406 = vtanh.pop %v820
      %v1407 = vtanh.pop %v822
      %v1408 = vtanh.pop %v1013
      %v1409 = vtanh.pop %v1015
      %v1410 = vtanh.pop %v1206
      %v1411 = vtanh.pop %v1208
      %v1412 = vtanh.pop %v633
      %v1413 = vtanh.pop %v635
      %v1414 = vtanh.pop %v826
      %v1415 = vtanh.pop %v828
      %v1416 = vtanh.pop %v1019
      %v1417 = vtanh.pop %v1021
      %v1418 = vtanh.pop %v1212
      %v1419 = vtanh.pop %v1214
      %v1420 = vtanh.pop %v637
      %v1421 = vtanh.pop %v639
      %v1422 = vtanh.pop %v830
      %v1423 = vtanh.pop %v832
      %v1424 = vtanh.pop %v1023
      %v1425 = vtanh.pop %v1025
      %v1426 = vtanh.pop %v1216
      %v1427 = vtanh.pop %v1218
      %v1428 = vtanh.pop %v643
      %v1429 = vtanh.pop %v645
      %v1430 = vtanh.pop %v836
      %v1431 = vtanh.pop %v838
      %v1432 = vtanh.pop %v1029
      %v1433 = vtanh.pop %v1031
      %v1434 = vtanh.pop %v1222
      %v1435 = vtanh.pop %v1224
      %v1436 = vtanh.pop %v647
      %v1437 = vtanh.pop %v649
      %v1438 = vtanh.pop %v840
      %v1439 = vtanh.pop %v842
      %v1440 = vtanh.pop %v1033
      %v1441 = vtanh.pop %v1035
      %v1442 = vtanh.pop %v1226
      %v1443 = vtanh.pop %v1228
      %v1444 = vtanh.pop %v653
      %v1445 = vtanh.pop %v655
      %v1446 = vtanh.pop %v846
      %v1447 = vtanh.pop %v848
      %v1448 = vtanh.pop %v1039
      %v1449 = vtanh.pop %v1041
      %v1450 = vtanh.pop %v1232
      %v1451 = vtanh.pop %v1234
      %v1452 = vtanh.pop %v657
      %v1453 = vtanh.pop %v659
      %v1454 = vtanh.pop %v850
      %v1455 = vtanh.pop %v852
      %v1456 = vtanh.pop %v1043
      %v1457 = vtanh.pop %v1045
      %v1458 = vtanh.pop %v1236
      %v1459 = vtanh.pop %v1238
      %v1460 = vtanh.pop %v663
      %v1461 = vtanh.pop %v665
      %v1462 = vtanh.pop %v856
      %v1463 = vtanh.pop %v858
      %v1464 = vtanh.pop %v1049
      %v1465 = vtanh.pop %v1051
      %v1466 = vtanh.pop %v1242
      %v1467 = vtanh.pop %v1244
      %v1468 = vtanh.pop %v667
      %v1469 = vtanh.pop %v669
      %v1470 = vtanh.pop %v860
      %v1471 = vtanh.pop %v862
      %v1472 = vtanh.pop %v1053
      %v1473 = vtanh.pop %v1055
      %v1474 = vtanh.pop %v1246
      %v1475 = vtanh.pop %v1248
      %v1476 = vtanh.pop %v673
      %v1477 = vtanh.pop %v675
      %v1478 = vtanh.pop %v866
      %v1479 = vtanh.pop %v868
      %v1480 = vtanh.pop %v1059
      %v1481 = vtanh.pop %v1061
      %v1482 = vtanh.pop %v1252
      %v1483 = vtanh.pop %v1254
      %v1484 = vtanh.pop %v677
      %v1485 = vtanh.pop %v679
      %v1486 = vtanh.pop %v870
      %v1487 = vtanh.pop %v872
      %v1488 = vtanh.pop %v1063
      %v1489 = vtanh.pop %v1065
      %v1490 = vtanh.pop %v1256
      %v1491 = vtanh.pop %v1258
      %v1492 = vtanh.pop %v683
      %v1493 = vtanh.pop %v685
      %v1494 = vtanh.pop %v876
      %v1495 = vtanh.pop %v878
      %v1496 = vtanh.pop %v1069
      %v1497 = vtanh.pop %v1071
      %v1498 = vtanh.pop %v1262
      %v1499 = vtanh.pop %v1264
      %v1500 = vtanh.pop %v687
      %v1501 = vtanh.pop %v689
      %v1502 = vtanh.pop %v880
      %v1503 = vtanh.pop %v882
      %v1504 = vtanh.pop %v1073
      %v1505 = vtanh.pop %v1075
      %v1506 = vtanh.pop %v1266
      %v1507 = vtanh.pop %v1268
      %v1508 = vtanh.pop %v693
      %v1509 = vtanh.pop %v695
      %v1510 = vtanh.pop %v886
      %v1511 = vtanh.pop %v888
      %v1512 = vtanh.pop %v1079
      %v1513 = vtanh.pop %v1081
      %v1514 = vtanh.pop %v1272
      %v1515 = vtanh.pop %v1274
      %v1516 = vtanh.pop %v697
      %v1517 = vtanh.pop %v699
      %v1518 = vtanh.pop %v890
      %v1519 = vtanh.pop %v892
      %v1520 = vtanh.pop %v1083
      %v1521 = vtanh.pop %v1085
      %v1522 = vtanh.pop %v1276
      %v1523 = vtanh.pop %v1278
      %v1524 = vtanh.pop %v703
      %v1525 = vtanh.pop %v705
      %v1526 = vtanh.pop %v896
      %v1527 = vtanh.pop %v898
      %v1528 = vtanh.pop %v1089
      %v1529 = vtanh.pop %v1091
      %v1530 = vtanh.pop %v1282
      %v1531 = vtanh.pop %v1284
      %v1532 = vtanh.pop %v707
      %v1533 = vtanh.pop %v709
      %v1534 = vtanh.pop %v900
      %v1535 = vtanh.pop %v902
      %v1536 = vtanh.pop %v1093
      %v1537 = vtanh.pop %v1095
      %v1538 = vtanh.pop %v1286
      %v1539 = vtanh.pop %v1288
      %v1540 = vtanh.pop %v713
      %v1541 = vtanh.pop %v715
      %v1542 = vtanh.pop %v906
      %v1543 = vtanh.pop %v908
      %v1544 = vtanh.pop %v1099
      %v1545 = vtanh.pop %v1101
      %v1546 = vtanh.pop %v1292
      %v1547 = vtanh.pop %v1294
      %v1548 = vtanh.pop %v717
      %v1549 = vtanh.pop %v719
      %v1550 = vtanh.pop %v910
      %v1551 = vtanh.pop %v912
      %v1552 = vtanh.pop %v1103
      %v1553 = vtanh.pop %v1105
      %v1554 = vtanh.pop %v1296
      %v1555 = vtanh.pop %v1298
      %v1556 = vpack.c.bf16 %v1308, %v1300
      %v1557 = vpack.c.bf16 %v1309, %v1301
      %v1558 = vpack.c.bf16 %v1310, %v1302
      %v1559 = vpack.c.bf16 %v1311, %v1303
      %v1560 = vpack.c.bf16 %v1312, %v1304
      %v1561 = vpack.c.bf16 %v1313, %v1305
      %v1562 = vpack.c.bf16 %v1314, %v1306
      %v1563 = vpack.c.bf16 %v1315, %v1307
      %v1564 = vpack.c.bf16 %v1324, %v1316
      %v1565 = vpack.c.bf16 %v1325, %v1317
      %v1566 = vpack.c.bf16 %v1326, %v1318
      %v1567 = vpack.c.bf16 %v1327, %v1319
      %v1568 = vpack.c.bf16 %v1328, %v1320
      %v1569 = vpack.c.bf16 %v1329, %v1321
      %v1570 = vpack.c.bf16 %v1330, %v1322
      %v1571 = vpack.c.bf16 %v1331, %v1323
      %v1572 = vpack.c.bf16 %v1340, %v1332
      %v1573 = vpack.c.bf16 %v1341, %v1333
      %v1574 = vpack.c.bf16 %v1342, %v1334
      %v1575 = vpack.c.bf16 %v1343, %v1335
      %v1576 = vpack.c.bf16 %v1344, %v1336
      %v1577 = vpack.c.bf16 %v1345, %v1337
      %v1578 = vpack.c.bf16 %v1346, %v1338
      %v1579 = vpack.c.bf16 %v1347, %v1339
      %v1580 = vpack.c.bf16 %v1356, %v1348
      %v1581 = vpack.c.bf16 %v1357, %v1349
      %v1582 = vpack.c.bf16 %v1358, %v1350
      %v1583 = vpack.c.bf16 %v1359, %v1351
      %v1584 = vpack.c.bf16 %v1360, %v1352
      %v1585 = vpack.c.bf16 %v1361, %v1353
      %v1586 = vpack.c.bf16 %v1362, %v1354
      %v1587 = vpack.c.bf16 %v1363, %v1355
      %v1588 = vpack.c.bf16 %v1372, %v1364
      %v1589 = vpack.c.bf16 %v1373, %v1365
      %v1590 = vpack.c.bf16 %v1374, %v1366
      %v1591 = vpack.c.bf16 %v1375, %v1367
      %v1592 = vpack.c.bf16 %v1376, %v1368
      %v1593 = vpack.c.bf16 %v1377, %v1369
      %v1594 = vpack.c.bf16 %v1378, %v1370
      %v1595 = vpack.c.bf16 %v1379, %v1371
      %v1596 = vpack.c.bf16 %v1388, %v1380
      %v1597 = vpack.c.bf16 %v1389, %v1381
      %v1598 = vpack.c.bf16 %v1390, %v1382
      %v1599 = vpack.c.bf16 %v1391, %v1383
      %v1600 = vpack.c.bf16 %v1392, %v1384
      %v1601 = vpack.c.bf16 %v1393, %v1385
      %v1602 = vpack.c.bf16 %v1394, %v1386
      %v1603 = vpack.c.bf16 %v1395, %v1387
      %v1604 = vpack.c.bf16 %v1404, %v1396
      %v1605 = vpack.c.bf16 %v1405, %v1397
      %v1606 = vpack.c.bf16 %v1406, %v1398
      %v1607 = vpack.c.bf16 %v1407, %v1399
      %v1608 = vpack.c.bf16 %v1408, %v1400
      %v1609 = vpack.c.bf16 %v1409, %v1401
      %v1610 = vpack.c.bf16 %v1410, %v1402
      %v1611 = vpack.c.bf16 %v1411, %v1403
      %v1612 = vpack.c.bf16 %v1420, %v1412
      %v1613 = vpack.c.bf16 %v1421, %v1413
      %v1614 = vpack.c.bf16 %v1422, %v1414
      %v1615 = vpack.c.bf16 %v1423, %v1415
      %v1616 = vpack.c.bf16 %v1424, %v1416
      %v1617 = vpack.c.bf16 %v1425, %v1417
      %v1618 = vpack.c.bf16 %v1426, %v1418
      %v1619 = vpack.c.bf16 %v1427, %v1419
      %v1620 = vpack.c.bf16 %v1436, %v1428
      %v1621 = vpack.c.bf16 %v1437, %v1429
      %v1622 = vpack.c.bf16 %v1438, %v1430
      %v1623 = vpack.c.bf16 %v1439, %v1431
      %v1624 = vpack.c.bf16 %v1440, %v1432
      %v1625 = vpack.c.bf16 %v1441, %v1433
      %v1626 = vpack.c.bf16 %v1442, %v1434
      %v1627 = vpack.c.bf16 %v1443, %v1435
      %v1628 = vpack.c.bf16 %v1452, %v1444
      %v1629 = vpack.c.bf16 %v1453, %v1445
      %v1630 = vpack.c.bf16 %v1454, %v1446
      %v1631 = vpack.c.bf16 %v1455, %v1447
      %v1632 = vpack.c.bf16 %v1456, %v1448
      %v1633 = vpack.c.bf16 %v1457, %v1449
      %v1634 = vpack.c.bf16 %v1458, %v1450
      %v1635 = vpack.c.bf16 %v1459, %v1451
      %v1636 = vpack.c.bf16 %v1468, %v1460
      %v1637 = vpack.c.bf16 %v1469, %v1461
      %v1638 = vpack.c.bf16 %v1470, %v1462
      %v1639 = vpack.c.bf16 %v1471, %v1463
      %v1640 = vpack.c.bf16 %v1472, %v1464
      %v1641 = vpack.c.bf16 %v1473, %v1465
      %v1642 = vpack.c.bf16 %v1474, %v1466
      %v1643 = vpack.c.bf16 %v1475, %v1467
      %v1644 = vpack.c.bf16 %v1484, %v1476
      %v1645 = vpack.c.bf16 %v1485, %v1477
      %v1646 = vpack.c.bf16 %v1486, %v1478
      %v1647 = vpack.c.bf16 %v1487, %v1479
      %v1648 = vpack.c.bf16 %v1488, %v1480
      %v1649 = vpack.c.bf16 %v1489, %v1481
      %v1650 = vpack.c.bf16 %v1490, %v1482
      %v1651 = vpack.c.bf16 %v1491, %v1483
      %v1652 = vpack.c.bf16 %v1500, %v1492
      %v1653 = vpack.c.bf16 %v1501, %v1493
      %v1654 = vpack.c.bf16 %v1502, %v1494
      %v1655 = vpack.c.bf16 %v1503, %v1495
      %v1656 = vpack.c.bf16 %v1504, %v1496
      %v1657 = vpack.c.bf16 %v1505, %v1497
      %v1658 = vpack.c.bf16 %v1506, %v1498
      %v1659 = vpack.c.bf16 %v1507, %v1499
      %v1660 = vpack.c.bf16 %v1516, %v1508
      %v1661 = vpack.c.bf16 %v1517, %v1509
      %v1662 = vpack.c.bf16 %v1518, %v1510
      %v1663 = vpack.c.bf16 %v1519, %v1511
      %v1664 = vpack.c.bf16 %v1520, %v1512
      %v1665 = vpack.c.bf16 %v1521, %v1513
      %v1666 = vpack.c.bf16 %v1522, %v1514
      %v1667 = vpack.c.bf16 %v1523, %v1515
      %v1668 = vpack.c.bf16 %v1532, %v1524
      %v1669 = vpack.c.bf16 %v1533, %v1525
      %v1670 = vpack.c.bf16 %v1534, %v1526
      %v1671 = vpack.c.bf16 %v1535, %v1527
      %v1672 = vpack.c.bf16 %v1536, %v1528
      %v1673 = vpack.c.bf16 %v1537, %v1529
      %v1674 = vpack.c.bf16 %v1538, %v1530
      %v1675 = vpack.c.bf16 %v1539, %v1531
      %v1676 = vpack.c.bf16 %v1548, %v1540
      %v1677 = vpack.c.bf16 %v1549, %v1541
      %v1678 = vpack.c.bf16 %v1550, %v1542
      %v1679 = vpack.c.bf16 %v1551, %v1543
      %v1680 = vpack.c.bf16 %v1552, %v1544
      %v1681 = vpack.c.bf16 %v1553, %v1545
      %v1682 = vpack.c.bf16 %v1554, %v1546
      %v1683 = vpack.c.bf16 %v1555, %v1547
      %v1684 = vld [vmem:[%s3] sm:$0xf]
      %v1685 = vld [vmem:[%s3 + $0x4] sm:$0xf]
      %v1686 = vld [vmem:[%s3 + $0x8] sm:$0xf]
      %v1687 = vld [vmem:[%s3 + $0xc] sm:$0xf]
      %v1688 = vld [vmem:[%s3 + $0x10] sm:$0xf]
      %v1689 = vld [vmem:[%s3 + $0x14] sm:$0xf]
      %v1690 = vld [vmem:[%s3 + $0x18] sm:$0xf]
      %v1691 = vld [vmem:[%s3 + $0x1c] sm:$0xf]
      %v1692 = vld [vmem:[%s3 + $0x20] sm:$0xf]
      %v1693 = vld [vmem:[%s3 + $0x24] sm:$0xf]
      %v1694 = vld [vmem:[%s3 + $0x28] sm:$0xf]
      %v1695 = vld [vmem:[%s3 + $0x2c] sm:$0xf]
      %v1696 = vld [vmem:[%s3 + $0x30] sm:$0xf]
      %v1697 = vld [vmem:[%s3 + $0x34] sm:$0xf]
      %v1698 = vld [vmem:[%s3 + $0x38] sm:$0xf]
      %v1699 = vld [vmem:[%s3 + $0x3c] sm:$0xf]
      %v1700 = vld [vmem:[%s3 + $0x40] sm:$0xf]
      %v1701 = vld [vmem:[%s3 + $0x44] sm:$0xf]
      %v1702 = vld [vmem:[%s3 + $0x48] sm:$0xf]
      %v1703 = vld [vmem:[%s3 + $0x4c] sm:$0xf]
      %v1704 = vld [vmem:[%s3 + $0x50] sm:$0xf]
      %v1705 = vld [vmem:[%s3 + $0x54] sm:$0xf]
      %v1706 = vld [vmem:[%s3 + $0x58] sm:$0xf]
      %v1707 = vld [vmem:[%s3 + $0x5c] sm:$0xf]
      %v1708 = vld [vmem:[%s3 + $0x60] sm:$0xf]
      %v1709 = vld [vmem:[%s3 + $0x64] sm:$0xf]
      %v1710 = vld [vmem:[%s3 + $0x68] sm:$0xf]
      %v1711 = vld [vmem:[%s3 + $0x6c] sm:$0xf]
      %v1712 = vld [vmem:[%s3 + $0x70] sm:$0xf]
      %v1713 = vld [vmem:[%s3 + $0x74] sm:$0xf]
      %v1714 = vld [vmem:[%s3 + $0x78] sm:$0xf]
      %v1715 = vld [vmem:[%s3 + $0x7c] sm:$0xf]
      %v1716 = vld [vmem:[%s3 + $0x80] sm:$0xf]
      %v1717 = vld [vmem:[%s3 + $0x84] sm:$0xf]
      %v1718 = vld [vmem:[%s3 + $0x88] sm:$0xf]
      %v1719 = vld [vmem:[%s3 + $0x8c] sm:$0xf]
      %v1720 = vld [vmem:[%s3 + $0x90] sm:$0xf]
      %v1721 = vld [vmem:[%s3 + $0x94] sm:$0xf]
      %v1722 = vld [vmem:[%s3 + $0x98] sm:$0xf]
      %v1723 = vld [vmem:[%s3 + $0x9c] sm:$0xf]
      %v1724 = vld [vmem:[%s3 + $0xa0] sm:$0xf]
      %v1725 = vld [vmem:[%s3 + $0xa4] sm:$0xf]
      %v1726 = vld [vmem:[%s3 + $0xa8] sm:$0xf]
      %v1727 = vld [vmem:[%s3 + $0xac] sm:$0xf]
      %v1728 = vld [vmem:[%s3 + $0xb0] sm:$0xf]
      %v1729 = vld [vmem:[%s3 + $0xb4] sm:$0xf]
      %v1730 = vld [vmem:[%s3 + $0xb8] sm:$0xf]
      %v1731 = vld [vmem:[%s3 + $0xbc] sm:$0xf]
      %v1732 = vld [vmem:[%s3 + $0xc0] sm:$0xf]
      %v1733 = vld [vmem:[%s3 + $0xc4] sm:$0xf]
      %v1734 = vld [vmem:[%s3 + $0xc8] sm:$0xf]
      %v1735 = vld [vmem:[%s3 + $0xcc] sm:$0xf]
      %v1736 = vld [vmem:[%s3 + $0xd0] sm:$0xf]
      %v1737 = vld [vmem:[%s3 + $0xd4] sm:$0xf]
      %v1738 = vld [vmem:[%s3 + $0xd8] sm:$0xf]
      %v1739 = vld [vmem:[%s3 + $0xdc] sm:$0xf]
      %v1740 = vld [vmem:[%s3 + $0xe0] sm:$0xf]
      %v1741 = vld [vmem:[%s3 + $0xe4] sm:$0xf]
      %v1742 = vld [vmem:[%s3 + $0xe8] sm:$0xf]
      %v1743 = vld [vmem:[%s3 + $0xec] sm:$0xf]
      %v1744 = vld [vmem:[%s3 + $0xf0] sm:$0xf]
      %v1745 = vld [vmem:[%s3 + $0xf4] sm:$0xf]
      %v1746 = vld [vmem:[%s3 + $0xf8] sm:$0xf]
      %v1747 = vld [vmem:[%s3 + $0xfc] sm:$0xf]
      %v1748 = vld [vmem:[%s3 + $0x100] sm:$0xf]
      %v1749 = vld [vmem:[%s3 + $0x104] sm:$0xf]
      %v1750 = vld [vmem:[%s3 + $0x108] sm:$0xf]
      %v1751 = vld [vmem:[%s3 + $0x10c] sm:$0xf]
      %v1752 = vld [vmem:[%s3 + $0x110] sm:$0xf]
      %v1753 = vld [vmem:[%s3 + $0x114] sm:$0xf]
      %v1754 = vld [vmem:[%s3 + $0x118] sm:$0xf]
      %v1755 = vld [vmem:[%s3 + $0x11c] sm:$0xf]
      %v1756 = vld [vmem:[%s3 + $0x120] sm:$0xf]
      %v1757 = vld [vmem:[%s3 + $0x124] sm:$0xf]
      %v1758 = vld [vmem:[%s3 + $0x128] sm:$0xf]
      %v1759 = vld [vmem:[%s3 + $0x12c] sm:$0xf]
      %v1760 = vld [vmem:[%s3 + $0x130] sm:$0xf]
      %v1761 = vld [vmem:[%s3 + $0x134] sm:$0xf]
      %v1762 = vld [vmem:[%s3 + $0x138] sm:$0xf]
      %v1763 = vld [vmem:[%s3 + $0x13c] sm:$0xf]
      %v1764 = vld [vmem:[%s3 + $0x140] sm:$0xf]
      %v1765 = vld [vmem:[%s3 + $0x144] sm:$0xf]
      %v1766 = vld [vmem:[%s3 + $0x148] sm:$0xf]
      %v1767 = vld [vmem:[%s3 + $0x14c] sm:$0xf]
      %v1768 = vld [vmem:[%s3 + $0x150] sm:$0xf]
      %v1769 = vld [vmem:[%s3 + $0x154] sm:$0xf]
      %v1770 = vld [vmem:[%s3 + $0x158] sm:$0xf]
      %v1771 = vld [vmem:[%s3 + $0x15c] sm:$0xf]
      %v1772 = vld [vmem:[%s3 + $0x160] sm:$0xf]
      %v1773 = vld [vmem:[%s3 + $0x164] sm:$0xf]
      %v1774 = vld [vmem:[%s3 + $0x168] sm:$0xf]
      %v1775 = vld [vmem:[%s3 + $0x16c] sm:$0xf]
      %v1776 = vld [vmem:[%s3 + $0x170] sm:$0xf]
      %v1777 = vld [vmem:[%s3 + $0x174] sm:$0xf]
      %v1778 = vld [vmem:[%s3 + $0x178] sm:$0xf]
      %v1779 = vld [vmem:[%s3 + $0x17c] sm:$0xf]
      %v1780 = vld [vmem:[%s3 + $0x180] sm:$0xf]
      %v1781 = vld [vmem:[%s3 + $0x184] sm:$0xf]
      %v1782 = vld [vmem:[%s3 + $0x188] sm:$0xf]
      %v1783 = vld [vmem:[%s3 + $0x18c] sm:$0xf]
      %v1784 = vld [vmem:[%s3 + $0x190] sm:$0xf]
      %v1785 = vld [vmem:[%s3 + $0x194] sm:$0xf]
      %v1786 = vld [vmem:[%s3 + $0x198] sm:$0xf]
      %v1787 = vld [vmem:[%s3 + $0x19c] sm:$0xf]
      %v1788 = vld [vmem:[%s3 + $0x1a0] sm:$0xf]
      %v1789 = vld [vmem:[%s3 + $0x1a4] sm:$0xf]
      %v1790 = vld [vmem:[%s3 + $0x1a8] sm:$0xf]
      %v1791 = vld [vmem:[%s3 + $0x1ac] sm:$0xf]
      %v1792 = vld [vmem:[%s3 + $0x1b0] sm:$0xf]
      %v1793 = vld [vmem:[%s3 + $0x1b4] sm:$0xf]
      %v1794 = vld [vmem:[%s3 + $0x1b8] sm:$0xf]
      %v1795 = vld [vmem:[%s3 + $0x1bc] sm:$0xf]
      %v1796 = vld [vmem:[%s3 + $0x1c0] sm:$0xf]
      %v1797 = vld [vmem:[%s3 + $0x1c4] sm:$0xf]
      %v1798 = vld [vmem:[%s3 + $0x1c8] sm:$0xf]
      %v1799 = vld [vmem:[%s3 + $0x1cc] sm:$0xf]
      %v1800 = vld [vmem:[%s3 + $0x1d0] sm:$0xf]
      %v1801 = vld [vmem:[%s3 + $0x1d4] sm:$0xf]
      %v1802 = vld [vmem:[%s3 + $0x1d8] sm:$0xf]
      %v1803 = vld [vmem:[%s3 + $0x1dc] sm:$0xf]
      %v1804 = vld [vmem:[%s3 + $0x1e0] sm:$0xf]
      %v1805 = vld [vmem:[%s3 + $0x1e4] sm:$0xf]
      %v1806 = vld [vmem:[%s3 + $0x1e8] sm:$0xf]
      %v1807 = vld [vmem:[%s3 + $0x1ec] sm:$0xf]
      %v1808 = vld [vmem:[%s3 + $0x1f0] sm:$0xf]
      %v1809 = vld [vmem:[%s3 + $0x1f4] sm:$0xf]
      %v1810 = vld [vmem:[%s3 + $0x1f8] sm:$0xf]
      %v1811 = vld [vmem:[%s3 + $0x1fc] sm:$0xf]
      %v1812 = vld [vmem:[%s4] sm:$0x1]
      %v1814 = vlaneseq
      %v1815 = vshrl.u32 %v1814, 7
      %v1816 = vsub.s32 0, %v1815
      %v1817 = vrot.slane %v1812, %v1816
      %v1947 = vunpack.c.l.b16 %v1684
      %v1948 = vunpack.c.l.b16 %v1685
      %v1949 = vunpack.c.l.b16 %v1686
      %v1950 = vunpack.c.l.b16 %v1687
      %v1951 = vunpack.c.l.b16 %v1688
      %v1952 = vunpack.c.l.b16 %v1689
      %v1953 = vunpack.c.l.b16 %v1690
      %v1954 = vunpack.c.l.b16 %v1691
      %v1955 = vunpack.c.l.b16 %v1692
      %v1956 = vunpack.c.l.b16 %v1693
      %v1957 = vunpack.c.l.b16 %v1694
      %v1958 = vunpack.c.l.b16 %v1695
      %v1959 = vunpack.c.l.b16 %v1696
      %v1960 = vunpack.c.l.b16 %v1697
      %v1961 = vunpack.c.l.b16 %v1698
      %v1962 = vunpack.c.l.b16 %v1699
      %v1963 = vunpack.c.l.b16 %v1700
      %v1964 = vunpack.c.l.b16 %v1701
      %v1965 = vunpack.c.l.b16 %v1702
      %v1966 = vunpack.c.l.b16 %v1703
      %v1967 = vunpack.c.l.b16 %v1704
      %v1968 = vunpack.c.l.b16 %v1705
      %v1969 = vunpack.c.l.b16 %v1706
      %v1970 = vunpack.c.l.b16 %v1707
      %v1971 = vunpack.c.l.b16 %v1708
      %v1972 = vunpack.c.l.b16 %v1709
      %v1973 = vunpack.c.l.b16 %v1710
      %v1974 = vunpack.c.l.b16 %v1711
      %v1975 = vunpack.c.l.b16 %v1712
      %v1976 = vunpack.c.l.b16 %v1713
      %v1977 = vunpack.c.l.b16 %v1714
      %v1978 = vunpack.c.l.b16 %v1715
      %v1979 = vunpack.c.l.b16 %v1716
      %v1980 = vunpack.c.l.b16 %v1717
      %v1981 = vunpack.c.l.b16 %v1718
      %v1982 = vunpack.c.l.b16 %v1719
      %v1983 = vunpack.c.l.b16 %v1720
      %v1984 = vunpack.c.l.b16 %v1721
      %v1985 = vunpack.c.l.b16 %v1722
      %v1986 = vunpack.c.l.b16 %v1723
      %v1987 = vunpack.c.l.b16 %v1724
      %v1988 = vunpack.c.l.b16 %v1725
      %v1989 = vunpack.c.l.b16 %v1726
      %v1990 = vunpack.c.l.b16 %v1727
      %v1991 = vunpack.c.l.b16 %v1728
      %v1992 = vunpack.c.l.b16 %v1729
      %v1993 = vunpack.c.l.b16 %v1730
      %v1994 = vunpack.c.l.b16 %v1731
      %v1995 = vunpack.c.l.b16 %v1732
      %v1996 = vunpack.c.l.b16 %v1733
      %v1997 = vunpack.c.l.b16 %v1734
      %v1998 = vunpack.c.l.b16 %v1735
      %v1999 = vunpack.c.l.b16 %v1736
      %v2000 = vunpack.c.l.b16 %v1737
      %v2001 = vunpack.c.l.b16 %v1738
      %v2002 = vunpack.c.l.b16 %v1739
      %v2003 = vunpack.c.l.b16 %v1740
      %v2004 = vunpack.c.l.b16 %v1741
      %v2005 = vunpack.c.l.b16 %v1742
      %v2006 = vunpack.c.l.b16 %v1743
      %v2007 = vunpack.c.l.b16 %v1744
      %v2008 = vunpack.c.l.b16 %v1745
      %v2009 = vunpack.c.l.b16 %v1746
      %v2010 = vunpack.c.l.b16 %v1747
      %v2011 = vunpack.c.l.b16 %v1748
      %v2012 = vunpack.c.l.b16 %v1749
      %v2013 = vunpack.c.l.b16 %v1750
      %v2014 = vunpack.c.l.b16 %v1751
      %v2015 = vunpack.c.l.b16 %v1752
      %v2016 = vunpack.c.l.b16 %v1753
      %v2017 = vunpack.c.l.b16 %v1754
      %v2018 = vunpack.c.l.b16 %v1755
      %v2019 = vunpack.c.l.b16 %v1756
      %v2020 = vunpack.c.l.b16 %v1757
      %v2021 = vunpack.c.l.b16 %v1758
      %v2022 = vunpack.c.l.b16 %v1759
      %v2023 = vunpack.c.l.b16 %v1760
      %v2024 = vunpack.c.l.b16 %v1761
      %v2025 = vunpack.c.l.b16 %v1762
      %v2026 = vunpack.c.l.b16 %v1763
      %v2027 = vunpack.c.l.b16 %v1764
      %v2028 = vunpack.c.l.b16 %v1765
      %v2029 = vunpack.c.l.b16 %v1766
      %v2030 = vunpack.c.l.b16 %v1767
      %v2031 = vunpack.c.l.b16 %v1768
      %v2032 = vunpack.c.l.b16 %v1769
      %v2033 = vunpack.c.l.b16 %v1770
      %v2034 = vunpack.c.l.b16 %v1771
      %v2035 = vunpack.c.l.b16 %v1772
      %v2036 = vunpack.c.l.b16 %v1773
      %v2037 = vunpack.c.l.b16 %v1774
      %v2038 = vunpack.c.l.b16 %v1775
      %v2039 = vunpack.c.l.b16 %v1776
      %v2040 = vunpack.c.l.b16 %v1777
      %v2041 = vunpack.c.l.b16 %v1778
      %v2042 = vunpack.c.l.b16 %v1779
      %v2043 = vunpack.c.l.b16 %v1780
      %v2044 = vunpack.c.l.b16 %v1781
      %v2045 = vunpack.c.l.b16 %v1782
      %v2046 = vunpack.c.l.b16 %v1783
      %v2047 = vunpack.c.l.b16 %v1784
      %v2048 = vunpack.c.l.b16 %v1785
      %v2049 = vunpack.c.l.b16 %v1786
      %v2050 = vunpack.c.l.b16 %v1787
      %v2051 = vunpack.c.l.b16 %v1788
      %v2052 = vunpack.c.l.b16 %v1789
      %v2053 = vunpack.c.l.b16 %v1790
      %v2054 = vunpack.c.l.b16 %v1791
      %v2055 = vunpack.c.l.b16 %v1792
      %v2056 = vunpack.c.l.b16 %v1793
      %v2057 = vunpack.c.l.b16 %v1794
      %v2058 = vunpack.c.l.b16 %v1795
      %v2059 = vunpack.c.l.b16 %v1796
      %v2060 = vunpack.c.l.b16 %v1797
      %v2061 = vunpack.c.l.b16 %v1798
      %v2062 = vunpack.c.l.b16 %v1799
      %v2063 = vunpack.c.l.b16 %v1800
      %v2064 = vunpack.c.l.b16 %v1801
      %v2065 = vunpack.c.l.b16 %v1802
      %v2066 = vunpack.c.l.b16 %v1803
      %v2067 = vunpack.c.l.b16 %v1804
      %v2068 = vunpack.c.l.b16 %v1805
      %v2069 = vunpack.c.l.b16 %v1806
      %v2070 = vunpack.c.l.b16 %v1807
      %v2071 = vunpack.c.l.b16 %v1808
      %v2072 = vunpack.c.l.b16 %v1809
      %v2073 = vunpack.c.l.b16 %v1810
      %v2074 = vunpack.c.l.b16 %v1811
      %v2075 = vpack.c.b16 %v1948, %v1947
      %v2076 = vpack.c.b16 %v1950, %v1949
      %v2077 = vpack.c.b16 %v1952, %v1951
      %v2078 = vpack.c.b16 %v1954, %v1953
      %v2079 = vpack.c.b16 %v1956, %v1955
      %v2080 = vpack.c.b16 %v1958, %v1957
      %v2081 = vpack.c.b16 %v1960, %v1959
      %v2082 = vpack.c.b16 %v1962, %v1961
      %v2083 = vpack.c.b16 %v1964, %v1963
      %v2084 = vpack.c.b16 %v1966, %v1965
      %v2085 = vpack.c.b16 %v1968, %v1967
      %v2086 = vpack.c.b16 %v1970, %v1969
      %v2087 = vpack.c.b16 %v1972, %v1971
      %v2088 = vpack.c.b16 %v1974, %v1973
      %v2089 = vpack.c.b16 %v1976, %v1975
      %v2090 = vpack.c.b16 %v1978, %v1977
      %v2091 = vpack.c.b16 %v1980, %v1979
      %v2092 = vpack.c.b16 %v1982, %v1981
      %v2093 = vpack.c.b16 %v1984, %v1983
      %v2094 = vpack.c.b16 %v1986, %v1985
      %v2095 = vpack.c.b16 %v1988, %v1987
      %v2096 = vpack.c.b16 %v1990, %v1989
      %v2097 = vpack.c.b16 %v1992, %v1991
      %v2098 = vpack.c.b16 %v1994, %v1993
      %v2099 = vpack.c.b16 %v1996, %v1995
      %v2100 = vpack.c.b16 %v1998, %v1997
      %v2101 = vpack.c.b16 %v2000, %v1999
      %v2102 = vpack.c.b16 %v2002, %v2001
      %v2103 = vpack.c.b16 %v2004, %v2003
      %v2104 = vpack.c.b16 %v2006, %v2005
      %v2105 = vpack.c.b16 %v2008, %v2007
      %v2106 = vpack.c.b16 %v2010, %v2009
      %v2107 = vpack.c.b16 %v2012, %v2011
      %v2108 = vpack.c.b16 %v2014, %v2013
      %v2109 = vpack.c.b16 %v2016, %v2015
      %v2110 = vpack.c.b16 %v2018, %v2017
      %v2111 = vpack.c.b16 %v2020, %v2019
      %v2112 = vpack.c.b16 %v2022, %v2021
      %v2113 = vpack.c.b16 %v2024, %v2023
      %v2114 = vpack.c.b16 %v2026, %v2025
      %v2115 = vpack.c.b16 %v2028, %v2027
      %v2116 = vpack.c.b16 %v2030, %v2029
      %v2117 = vpack.c.b16 %v2032, %v2031
      %v2118 = vpack.c.b16 %v2034, %v2033
      %v2119 = vpack.c.b16 %v2036, %v2035
      %v2120 = vpack.c.b16 %v2038, %v2037
      %v2121 = vpack.c.b16 %v2040, %v2039
      %v2122 = vpack.c.b16 %v2042, %v2041
      %v2123 = vpack.c.b16 %v2044, %v2043
      %v2124 = vpack.c.b16 %v2046, %v2045
      %v2125 = vpack.c.b16 %v2048, %v2047
      %v2126 = vpack.c.b16 %v2050, %v2049
      %v2127 = vpack.c.b16 %v2052, %v2051
      %v2128 = vpack.c.b16 %v2054, %v2053
      %v2129 = vpack.c.b16 %v2056, %v2055
      %v2130 = vpack.c.b16 %v2058, %v2057
      %v2131 = vpack.c.b16 %v2060, %v2059
      %v2132 = vpack.c.b16 %v2062, %v2061
      %v2133 = vpack.c.b16 %v2064, %v2063
      %v2134 = vpack.c.b16 %v2066, %v2065
      %v2135 = vpack.c.b16 %v2068, %v2067
      %v2136 = vpack.c.b16 %v2070, %v2069
      %v2137 = vpack.c.b16 %v2072, %v2071
      %v2138 = vpack.c.b16 %v2074, %v2073
      %2203 = vmatprep.subr.bf16.mxu0 0
      %2204 = vmatpush1.bf16.msra.mxu0 %v2082
      %2205 = vmatprep.subr.bf16.mxu0 0
      %2206 = vmatpush1.bf16.msra.mxu0 %v2081
      %2207 = vmatprep.subr.bf16.mxu0 0
      %2208 = vmatpush1.bf16.msra.mxu0 %v2080
      %2209 = vmatprep.subr.bf16.mxu0 0
      %2210 = vmatpush1.bf16.msra.mxu0 %v2079
      %2211 = vmatprep.subr.bf16.mxu0 0
      %2212 = vmatpush1.bf16.msra.mxu0 %v2078
      %2213 = vmatprep.subr.bf16.mxu0 0
      %2214 = vmatpush1.bf16.msra.mxu0 %v2077
      %2215 = vmatprep.subr.bf16.mxu0 0
      %2216 = vmatpush1.bf16.msra.mxu0 %v2076
      %2217 = vmatprep.subr.bf16.mxu0 0
      %2218 = vmatpush1.bf16.msra.mxu0 %v2075
      %2219 = vmatprep.subr.bf16.mxu0 0
      %2220 = vmatpush2.bf16.msra.mxu0 %v2090
      %2221 = vmatprep.subr.bf16.mxu0 0
      %2222 = vmatpush2.bf16.msra.mxu0 %v2089
      %2223 = vmatprep.subr.bf16.mxu0 0
      %2224 = vmatpush2.bf16.msra.mxu0 %v2088
      %2225 = vmatprep.subr.bf16.mxu0 0
      %2226 = vmatpush2.bf16.msra.mxu0 %v2087
      %2227 = vmatprep.subr.bf16.mxu0 0
      %2228 = vmatpush2.bf16.msra.mxu0 %v2086
      %2229 = vmatprep.subr.bf16.mxu0 0
      %2230 = vmatpush2.bf16.msra.mxu0 %v2085
      %2231 = vmatprep.subr.bf16.mxu0 0
      %2232 = vmatpush2.bf16.msra.mxu0 %v2084
      %2233 = vmatprep.subr.bf16.mxu0 0
      %2234 = vmatpush2.bf16.msra.mxu0 %v2083
      %2235 = vmatprep.mubr.bf16.mxu0 %v1557
      %2236 = vmatmul.mubr.bf16.gmra.mxu0 %v1556
      %v2237 = vpop.f32.mrf.mxu0
      %v2238 = vadd.f32 %v1817, %v2237
      %v2239 = vpop.f32.mrf.mxu0
      %v2240 = vpop.f32.mrf.mxu0
      %v2241 = vadd.f32 %v1817, %v2240
      %v2242 = vpop.f32.mrf.mxu0
      %2243 = vmatprep.mubr.bf16.mxu0 %v1565
      %2244 = vmatmul.mubr.bf16.gmra.mxu0 %v1564
      %v2245 = vpop.f32.mrf.mxu0
      %v2246 = vadd.f32 %v1817, %v2245
      %v2247 = vpop.f32.mrf.mxu0
      %v2248 = vpop.f32.mrf.mxu0
      %v2249 = vadd.f32 %v1817, %v2248
      %v2250 = vpop.f32.mrf.mxu0
      %2251 = vmatprep.mubr.bf16.mxu0 %v1573
      %2252 = vmatmul.mubr.bf16.gmra.mxu0 %v1572
      %v2253 = vpop.f32.mrf.mxu0
      %v2254 = vadd.f32 %v1817, %v2253
      %v2255 = vpop.f32.mrf.mxu0
      %v2256 = vpop.f32.mrf.mxu0
      %v2257 = vadd.f32 %v1817, %v2256
      %v2258 = vpop.f32.mrf.mxu0
      %2259 = vmatprep.mubr.bf16.mxu0 %v1581
      %2260 = vmatmul.mubr.bf16.gmra.mxu0 %v1580
      %v2261 = vpop.f32.mrf.mxu0
      %v2262 = vadd.f32 %v1817, %v2261
      %v2263 = vpop.f32.mrf.mxu0
      %v2264 = vpop.f32.mrf.mxu0
      %v2265 = vadd.f32 %v1817, %v2264
      %v2266 = vpop.f32.mrf.mxu0
      %2267 = vmatprep.mubr.bf16.mxu0 %v1589
      %2268 = vmatmul.mubr.bf16.gmra.mxu0 %v1588
      %v2269 = vpop.f32.mrf.mxu0
      %v2270 = vadd.f32 %v1817, %v2269
      %v2271 = vpop.f32.mrf.mxu0
      %v2272 = vpop.f32.mrf.mxu0
      %v2273 = vadd.f32 %v1817, %v2272
      %v2274 = vpop.f32.mrf.mxu0
      %2275 = vmatprep.mubr.bf16.mxu0 %v1597
      %2276 = vmatmul.mubr.bf16.gmra.mxu0 %v1596
      %v2277 = vpop.f32.mrf.mxu0
      %v2278 = vadd.f32 %v1817, %v2277
      %v2279 = vpop.f32.mrf.mxu0
      %v2280 = vpop.f32.mrf.mxu0
      %v2281 = vadd.f32 %v1817, %v2280
      %v2282 = vpop.f32.mrf.mxu0
      %2283 = vmatprep.mubr.bf16.mxu0 %v1605
      %2284 = vmatmul.mubr.bf16.gmra.mxu0 %v1604
      %v2285 = vpop.f32.mrf.mxu0
      %v2286 = vadd.f32 %v1817, %v2285
      %v2287 = vpop.f32.mrf.mxu0
      %v2288 = vpop.f32.mrf.mxu0
      %v2289 = vadd.f32 %v1817, %v2288
      %v2290 = vpop.f32.mrf.mxu0
      %2291 = vmatprep.mubr.bf16.mxu0 %v1613
      %2292 = vmatmul.mubr.bf16.gmra.mxu0 %v1612
      %v2293 = vpop.f32.mrf.mxu0
      %v2294 = vadd.f32 %v1817, %v2293
      %v2295 = vpop.f32.mrf.mxu0
      %v2296 = vpop.f32.mrf.mxu0
      %v2297 = vadd.f32 %v1817, %v2296
      %v2298 = vpop.f32.mrf.mxu0
      %2299 = vmatprep.mubr.bf16.mxu0 %v1621
      %2300 = vmatmul.mubr.bf16.gmra.mxu0 %v1620
      %v2301 = vpop.f32.mrf.mxu0
      %v2302 = vadd.f32 %v1817, %v2301
      %v2303 = vpop.f32.mrf.mxu0
      %v2304 = vpop.f32.mrf.mxu0
      %v2305 = vadd.f32 %v1817, %v2304
      %v2306 = vpop.f32.mrf.mxu0
      %2307 = vmatprep.mubr.bf16.mxu0 %v1629
      %2308 = vmatmul.mubr.bf16.gmra.mxu0 %v1628
      %v2309 = vpop.f32.mrf.mxu0
      %v2310 = vadd.f32 %v1817, %v2309
      %v2311 = vpop.f32.mrf.mxu0
      %v2312 = vpop.f32.mrf.mxu0
      %v2313 = vadd.f32 %v1817, %v2312
      %v2314 = vpop.f32.mrf.mxu0
      %2315 = vmatprep.mubr.bf16.mxu0 %v1637
      %2316 = vmatmul.mubr.bf16.gmra.mxu0 %v1636
      %v2317 = vpop.f32.mrf.mxu0
      %v2318 = vadd.f32 %v1817, %v2317
      %v2319 = vpop.f32.mrf.mxu0
      %v2320 = vpop.f32.mrf.mxu0
      %v2321 = vadd.f32 %v1817, %v2320
      %v2322 = vpop.f32.mrf.mxu0
      %2323 = vmatprep.mubr.bf16.mxu0 %v1645
      %2324 = vmatmul.mubr.bf16.gmra.mxu0 %v1644
      %v2325 = vpop.f32.mrf.mxu0
      %v2326 = vadd.f32 %v1817, %v2325
      %v2327 = vpop.f32.mrf.mxu0
      %v2328 = vpop.f32.mrf.mxu0
      %v2329 = vadd.f32 %v1817, %v2328
      %v2330 = vpop.f32.mrf.mxu0
      %2331 = vmatprep.mubr.bf16.mxu0 %v1653
      %2332 = vmatmul.mubr.bf16.gmra.mxu0 %v1652
      %v2333 = vpop.f32.mrf.mxu0
      %v2334 = vadd.f32 %v1817, %v2333
      %v2335 = vpop.f32.mrf.mxu0
      %v2336 = vpop.f32.mrf.mxu0
      %v2337 = vadd.f32 %v1817, %v2336
      %v2338 = vpop.f32.mrf.mxu0
      %2339 = vmatprep.mubr.bf16.mxu0 %v1661
      %2340 = vmatmul.mubr.bf16.gmra.mxu0 %v1660
      %v2341 = vpop.f32.mrf.mxu0
      %v2342 = vadd.f32 %v1817, %v2341
      %v2343 = vpop.f32.mrf.mxu0
      %v2344 = vpop.f32.mrf.mxu0
      %v2345 = vadd.f32 %v1817, %v2344
      %v2346 = vpop.f32.mrf.mxu0
      %2347 = vmatprep.mubr.bf16.mxu0 %v1669
      %2348 = vmatmul.mubr.bf16.gmra.mxu0 %v1668
      %v2349 = vpop.f32.mrf.mxu0
      %v2350 = vadd.f32 %v1817, %v2349
      %v2351 = vpop.f32.mrf.mxu0
      %v2352 = vpop.f32.mrf.mxu0
      %v2353 = vadd.f32 %v1817, %v2352
      %v2354 = vpop.f32.mrf.mxu0
      %2355 = vmatprep.mubr.bf16.mxu0 %v1677
      %2356 = vmatmul.mubr.bf16.gmra.mxu0 %v1676
      %v2357 = vpop.f32.mrf.mxu0
      %v2358 = vadd.f32 %v1817, %v2357
      %v2359 = vpop.f32.mrf.mxu0
      %v2360 = vpop.f32.mrf.mxu0
      %v2361 = vadd.f32 %v1817, %v2360
      %v2362 = vpop.f32.mrf.mxu0
      %2363 = vdwg.mxu0
      %2364 = vmatprep.subr.bf16.mxu0 0
      %2365 = vmatpush1.bf16.msra.mxu0 %v2098
      %2366 = vmatprep.subr.bf16.mxu0 0
      %2367 = vmatpush1.bf16.msra.mxu0 %v2097
      %2368 = vmatprep.subr.bf16.mxu0 0
      %2369 = vmatpush1.bf16.msra.mxu0 %v2096
      %2370 = vmatprep.subr.bf16.mxu0 0
      %2371 = vmatpush1.bf16.msra.mxu0 %v2095
      %2372 = vmatprep.subr.bf16.mxu0 0
      %2373 = vmatpush1.bf16.msra.mxu0 %v2094
      %2374 = vmatprep.subr.bf16.mxu0 0
      %2375 = vmatpush1.bf16.msra.mxu0 %v2093
      %2376 = vmatprep.subr.bf16.mxu0 0
      %2377 = vmatpush1.bf16.msra.mxu0 %v2092
      %2378 = vmatprep.subr.bf16.mxu0 0
      %2379 = vmatpush1.bf16.msra.mxu0 %v2091
      %2380 = vmatprep.subr.bf16.mxu0 0
      %2381 = vmatpush2.bf16.msra.mxu0 %v2106
      %2382 = vmatprep.subr.bf16.mxu0 0
      %2383 = vmatpush2.bf16.msra.mxu0 %v2105
      %2384 = vmatprep.subr.bf16.mxu0 0
      %2385 = vmatpush2.bf16.msra.mxu0 %v2104
      %2386 = vmatprep.subr.bf16.mxu0 0
      %2387 = vmatpush2.bf16.msra.mxu0 %v2103
      %2388 = vmatprep.subr.bf16.mxu0 0
      %2389 = vmatpush2.bf16.msra.mxu0 %v2102
      %2390 = vmatprep.subr.bf16.mxu0 0
      %2391 = vmatpush2.bf16.msra.mxu0 %v2101
      %2392 = vmatprep.subr.bf16.mxu0 0
      %2393 = vmatpush2.bf16.msra.mxu0 %v2100
      %2394 = vmatprep.subr.bf16.mxu0 0
      %2395 = vmatpush2.bf16.msra.mxu0 %v2099
      %2396 = vmatprep.mubr.bf16.mxu0 %v1559
      %2397 = vmatmul.mubr.bf16.gmra.mxu0 %v1558
      %v2398 = vpop.f32.mrf.mxu0
      %v2399 = vadd.f32 %v2238, %v2398
      %v2400 = vpop.f32.mrf.mxu0
      %v2401 = vpop.f32.mrf.mxu0
      %v2402 = vadd.f32 %v2241, %v2401
      %v2403 = vpop.f32.mrf.mxu0
      %2404 = vmatprep.mubr.bf16.mxu0 %v1567
      %2405 = vmatmul.mubr.bf16.gmra.mxu0 %v1566
      %v2406 = vpop.f32.mrf.mxu0
      %v2407 = vadd.f32 %v2246, %v2406
      %v2408 = vpop.f32.mrf.mxu0
      %v2409 = vpop.f32.mrf.mxu0
      %v2410 = vadd.f32 %v2249, %v2409
      %v2411 = vpop.f32.mrf.mxu0
      %2412 = vmatprep.mubr.bf16.mxu0 %v1575
      %2413 = vmatmul.mubr.bf16.gmra.mxu0 %v1574
      %v2414 = vpop.f32.mrf.mxu0
      %v2415 = vadd.f32 %v2254, %v2414
      %v2416 = vpop.f32.mrf.mxu0
      %v2417 = vpop.f32.mrf.mxu0
      %v2418 = vadd.f32 %v2257, %v2417
      %v2419 = vpop.f32.mrf.mxu0
      %2420 = vmatprep.mubr.bf16.mxu0 %v1583
      %2421 = vmatmul.mubr.bf16.gmra.mxu0 %v1582
      %v2422 = vpop.f32.mrf.mxu0
      %v2423 = vadd.f32 %v2262, %v2422
      %v2424 = vpop.f32.mrf.mxu0
      %v2425 = vpop.f32.mrf.mxu0
      %v2426 = vadd.f32 %v2265, %v2425
      %v2427 = vpop.f32.mrf.mxu0
      %2428 = vmatprep.mubr.bf16.mxu0 %v1591
      %2429 = vmatmul.mubr.bf16.gmra.mxu0 %v1590
      %v2430 = vpop.f32.mrf.mxu0
      %v2431 = vadd.f32 %v2270, %v2430
      %v2432 = vpop.f32.mrf.mxu0
      %v2433 = vpop.f32.mrf.mxu0
      %v2434 = vadd.f32 %v2273, %v2433
      %v2435 = vpop.f32.mrf.mxu0
      %2436 = vmatprep.mubr.bf16.mxu0 %v1599
      %2437 = vmatmul.mubr.bf16.gmra.mxu0 %v1598
      %v2438 = vpop.f32.mrf.mxu0
      %v2439 = vadd.f32 %v2278, %v2438
      %v2440 = vpop.f32.mrf.mxu0
      %v2441 = vpop.f32.mrf.mxu0
      %v2442 = vadd.f32 %v2281, %v2441
      %v2443 = vpop.f32.mrf.mxu0
      %2444 = vmatprep.mubr.bf16.mxu0 %v1607
      %2445 = vmatmul.mubr.bf16.gmra.mxu0 %v1606
      %v2446 = vpop.f32.mrf.mxu0
      %v2447 = vadd.f32 %v2286, %v2446
      %v2448 = vpop.f32.mrf.mxu0
      %v2449 = vpop.f32.mrf.mxu0
      %v2450 = vadd.f32 %v2289, %v2449
      %v2451 = vpop.f32.mrf.mxu0
      %2452 = vmatprep.mubr.bf16.mxu0 %v1615
      %2453 = vmatmul.mubr.bf16.gmra.mxu0 %v1614
      %v2454 = vpop.f32.mrf.mxu0
      %v2455 = vadd.f32 %v2294, %v2454
      %v2456 = vpop.f32.mrf.mxu0
      %v2457 = vpop.f32.mrf.mxu0
      %v2458 = vadd.f32 %v2297, %v2457
      %v2459 = vpop.f32.mrf.mxu0
      %2460 = vmatprep.mubr.bf16.mxu0 %v1623
      %2461 = vmatmul.mubr.bf16.gmra.mxu0 %v1622
      %v2462 = vpop.f32.mrf.mxu0
      %v2463 = vadd.f32 %v2302, %v2462
      %v2464 = vpop.f32.mrf.mxu0
      %v2465 = vpop.f32.mrf.mxu0
      %v2466 = vadd.f32 %v2305, %v2465
      %v2467 = vpop.f32.mrf.mxu0
      %2468 = vmatprep.mubr.bf16.mxu0 %v1631
      %2469 = vmatmul.mubr.bf16.gmra.mxu0 %v1630
      %v2470 = vpop.f32.mrf.mxu0
      %v2471 = vadd.f32 %v2310, %v2470
      %v2472 = vpop.f32.mrf.mxu0
      %v2473 = vpop.f32.mrf.mxu0
      %v2474 = vadd.f32 %v2313, %v2473
      %v2475 = vpop.f32.mrf.mxu0
      %2476 = vmatprep.mubr.bf16.mxu0 %v1639
      %2477 = vmatmul.mubr.bf16.gmra.mxu0 %v1638
      %v2478 = vpop.f32.mrf.mxu0
      %v2479 = vadd.f32 %v2318, %v2478
      %v2480 = vpop.f32.mrf.mxu0
      %v2481 = vpop.f32.mrf.mxu0
      %v2482 = vadd.f32 %v2321, %v2481
      %v2483 = vpop.f32.mrf.mxu0
      %2484 = vmatprep.mubr.bf16.mxu0 %v1647
      %2485 = vmatmul.mubr.bf16.gmra.mxu0 %v1646
      %v2486 = vpop.f32.mrf.mxu0
      %v2487 = vadd.f32 %v2326, %v2486
      %v2488 = vpop.f32.mrf.mxu0
      %v2489 = vpop.f32.mrf.mxu0
      %v2490 = vadd.f32 %v2329, %v2489
      %v2491 = vpop.f32.mrf.mxu0
      %2492 = vmatprep.mubr.bf16.mxu0 %v1655
      %2493 = vmatmul.mubr.bf16.gmra.mxu0 %v1654
      %v2494 = vpop.f32.mrf.mxu0
      %v2495 = vadd.f32 %v2334, %v2494
      %v2496 = vpop.f32.mrf.mxu0
      %v2497 = vpop.f32.mrf.mxu0
      %v2498 = vadd.f32 %v2337, %v2497
      %v2499 = vpop.f32.mrf.mxu0
      %2500 = vmatprep.mubr.bf16.mxu0 %v1663
      %2501 = vmatmul.mubr.bf16.gmra.mxu0 %v1662
      %v2502 = vpop.f32.mrf.mxu0
      %v2503 = vadd.f32 %v2342, %v2502
      %v2504 = vpop.f32.mrf.mxu0
      %v2505 = vpop.f32.mrf.mxu0
      %v2506 = vadd.f32 %v2345, %v2505
      %v2507 = vpop.f32.mrf.mxu0
      %2508 = vmatprep.mubr.bf16.mxu0 %v1671
      %2509 = vmatmul.mubr.bf16.gmra.mxu0 %v1670
      %v2510 = vpop.f32.mrf.mxu0
      %v2511 = vadd.f32 %v2350, %v2510
      %v2512 = vpop.f32.mrf.mxu0
      %v2513 = vpop.f32.mrf.mxu0
      %v2514 = vadd.f32 %v2353, %v2513
      %v2515 = vpop.f32.mrf.mxu0
      %2516 = vmatprep.mubr.bf16.mxu0 %v1679
      %2517 = vmatmul.mubr.bf16.gmra.mxu0 %v1678
      %v2518 = vpop.f32.mrf.mxu0
      %v2519 = vadd.f32 %v2358, %v2518
      %v2520 = vpop.f32.mrf.mxu0
      %v2521 = vpop.f32.mrf.mxu0
      %v2522 = vadd.f32 %v2361, %v2521
      %v2523 = vpop.f32.mrf.mxu0
      %2524 = vdwg.mxu0
      %2525 = vmatprep.subr.bf16.mxu0 0
      %2526 = vmatpush1.bf16.msra.mxu0 %v2114
      %2527 = vmatprep.subr.bf16.mxu0 0
      %2528 = vmatpush1.bf16.msra.mxu0 %v2113
      %2529 = vmatprep.subr.bf16.mxu0 0
      %2530 = vmatpush1.bf16.msra.mxu0 %v2112
      %2531 = vmatprep.subr.bf16.mxu0 0
      %2532 = vmatpush1.bf16.msra.mxu0 %v2111
      %2533 = vmatprep.subr.bf16.mxu0 0
      %2534 = vmatpush1.bf16.msra.mxu0 %v2110
      %2535 = vmatprep.subr.bf16.mxu0 0
      %2536 = vmatpush1.bf16.msra.mxu0 %v2109
      %2537 = vmatprep.subr.bf16.mxu0 0
      %2538 = vmatpush1.bf16.msra.mxu0 %v2108
      %2539 = vmatprep.subr.bf16.mxu0 0
      %2540 = vmatpush1.bf16.msra.mxu0 %v2107
      %2541 = vmatprep.subr.bf16.mxu0 0
      %2542 = vmatpush2.bf16.msra.mxu0 %v2122
      %2543 = vmatprep.subr.bf16.mxu0 0
      %2544 = vmatpush2.bf16.msra.mxu0 %v2121
      %2545 = vmatprep.subr.bf16.mxu0 0
      %2546 = vmatpush2.bf16.msra.mxu0 %v2120
      %2547 = vmatprep.subr.bf16.mxu0 0
      %2548 = vmatpush2.bf16.msra.mxu0 %v2119
      %2549 = vmatprep.subr.bf16.mxu0 0
      %2550 = vmatpush2.bf16.msra.mxu0 %v2118
      %2551 = vmatprep.subr.bf16.mxu0 0
      %2552 = vmatpush2.bf16.msra.mxu0 %v2117
      %2553 = vmatprep.subr.bf16.mxu0 0
      %2554 = vmatpush2.bf16.msra.mxu0 %v2116
      %2555 = vmatprep.subr.bf16.mxu0 0
      %2556 = vmatpush2.bf16.msra.mxu0 %v2115
      %2557 = vmatprep.mubr.bf16.mxu0 %v1561
      %2558 = vmatmul.mubr.bf16.gmra.mxu0 %v1560
      %v2559 = vpop.f32.mrf.mxu0
      %v2560 = vadd.f32 %v2399, %v2559
      %v2561 = vpop.f32.mrf.mxu0
      %v2562 = vpop.f32.mrf.mxu0
      %v2563 = vadd.f32 %v2402, %v2562
      %v2564 = vpop.f32.mrf.mxu0
      %2565 = vmatprep.mubr.bf16.mxu0 %v1569
      %2566 = vmatmul.mubr.bf16.gmra.mxu0 %v1568
      %v2567 = vpop.f32.mrf.mxu0
      %v2568 = vadd.f32 %v2407, %v2567
      %v2569 = vpop.f32.mrf.mxu0
      %v2570 = vpop.f32.mrf.mxu0
      %v2571 = vadd.f32 %v2410, %v2570
      %v2572 = vpop.f32.mrf.mxu0
      %2573 = vmatprep.mubr.bf16.mxu0 %v1577
      %2574 = vmatmul.mubr.bf16.gmra.mxu0 %v1576
      %v2575 = vpop.f32.mrf.mxu0
      %v2576 = vadd.f32 %v2415, %v2575
      %v2577 = vpop.f32.mrf.mxu0
      %v2578 = vpop.f32.mrf.mxu0
      %v2579 = vadd.f32 %v2418, %v2578
      %v2580 = vpop.f32.mrf.mxu0
      %2581 = vmatprep.mubr.bf16.mxu0 %v1585
      %2582 = vmatmul.mubr.bf16.gmra.mxu0 %v1584
      %v2583 = vpop.f32.mrf.mxu0
      %v2584 = vadd.f32 %v2423, %v2583
      %v2585 = vpop.f32.mrf.mxu0
      %v2586 = vpop.f32.mrf.mxu0
      %v2587 = vadd.f32 %v2426, %v2586
      %v2588 = vpop.f32.mrf.mxu0
      %2589 = vmatprep.mubr.bf16.mxu0 %v1593
      %2590 = vmatmul.mubr.bf16.gmra.mxu0 %v1592
      %v2591 = vpop.f32.mrf.mxu0
      %v2592 = vadd.f32 %v2431, %v2591
      %v2593 = vpop.f32.mrf.mxu0
      %v2594 = vpop.f32.mrf.mxu0
      %v2595 = vadd.f32 %v2434, %v2594
      %v2596 = vpop.f32.mrf.mxu0
      %2597 = vmatprep.mubr.bf16.mxu0 %v1601
      %2598 = vmatmul.mubr.bf16.gmra.mxu0 %v1600
      %v2599 = vpop.f32.mrf.mxu0
      %v2600 = vadd.f32 %v2439, %v2599
      %v2601 = vpop.f32.mrf.mxu0
      %v2602 = vpop.f32.mrf.mxu0
      %v2603 = vadd.f32 %v2442, %v2602
      %v2604 = vpop.f32.mrf.mxu0
      %2605 = vmatprep.mubr.bf16.mxu0 %v1609
      %2606 = vmatmul.mubr.bf16.gmra.mxu0 %v1608
      %v2607 = vpop.f32.mrf.mxu0
      %v2608 = vadd.f32 %v2447, %v2607
      %v2609 = vpop.f32.mrf.mxu0
      %v2610 = vpop.f32.mrf.mxu0
      %v2611 = vadd.f32 %v2450, %v2610
      %v2612 = vpop.f32.mrf.mxu0
      %2613 = vmatprep.mubr.bf16.mxu0 %v1617
      %2614 = vmatmul.mubr.bf16.gmra.mxu0 %v1616
      %v2615 = vpop.f32.mrf.mxu0
      %v2616 = vadd.f32 %v2455, %v2615
      %v2617 = vpop.f32.mrf.mxu0
      %v2618 = vpop.f32.mrf.mxu0
      %v2619 = vadd.f32 %v2458, %v2618
      %v2620 = vpop.f32.mrf.mxu0
      %2621 = vmatprep.mubr.bf16.mxu0 %v1625
      %2622 = vmatmul.mubr.bf16.gmra.mxu0 %v1624
      %v2623 = vpop.f32.mrf.mxu0
      %v2624 = vadd.f32 %v2463, %v2623
      %v2625 = vpop.f32.mrf.mxu0
      %v2626 = vpop.f32.mrf.mxu0
      %v2627 = vadd.f32 %v2466, %v2626
      %v2628 = vpop.f32.mrf.mxu0
      %2629 = vmatprep.mubr.bf16.mxu0 %v1633
      %2630 = vmatmul.mubr.bf16.gmra.mxu0 %v1632
      %v2631 = vpop.f32.mrf.mxu0
      %v2632 = vadd.f32 %v2471, %v2631
      %v2633 = vpop.f32.mrf.mxu0
      %v2634 = vpop.f32.mrf.mxu0
      %v2635 = vadd.f32 %v2474, %v2634
      %v2636 = vpop.f32.mrf.mxu0
      %2637 = vmatprep.mubr.bf16.mxu0 %v1641
      %2638 = vmatmul.mubr.bf16.gmra.mxu0 %v1640
      %v2639 = vpop.f32.mrf.mxu0
      %v2640 = vadd.f32 %v2479, %v2639
      %v2641 = vpop.f32.mrf.mxu0
      %v2642 = vpop.f32.mrf.mxu0
      %v2643 = vadd.f32 %v2482, %v2642
      %v2644 = vpop.f32.mrf.mxu0
      %2645 = vmatprep.mubr.bf16.mxu0 %v1649
      %2646 = vmatmul.mubr.bf16.gmra.mxu0 %v1648
      %v2647 = vpop.f32.mrf.mxu0
      %v2648 = vadd.f32 %v2487, %v2647
      %v2649 = vpop.f32.mrf.mxu0
      %v2650 = vpop.f32.mrf.mxu0
      %v2651 = vadd.f32 %v2490, %v2650
      %v2652 = vpop.f32.mrf.mxu0
      %2653 = vmatprep.mubr.bf16.mxu0 %v1657
      %2654 = vmatmul.mubr.bf16.gmra.mxu0 %v1656
      %v2655 = vpop.f32.mrf.mxu0
      %v2656 = vadd.f32 %v2495, %v2655
      %v2657 = vpop.f32.mrf.mxu0
      %v2658 = vpop.f32.mrf.mxu0
      %v2659 = vadd.f32 %v2498, %v2658
      %v2660 = vpop.f32.mrf.mxu0
      %2661 = vmatprep.mubr.bf16.mxu0 %v1665
      %2662 = vmatmul.mubr.bf16.gmra.mxu0 %v1664
      %v2663 = vpop.f32.mrf.mxu0
      %v2664 = vadd.f32 %v2503, %v2663
      %v2665 = vpop.f32.mrf.mxu0
      %v2666 = vpop.f32.mrf.mxu0
      %v2667 = vadd.f32 %v2506, %v2666
      %v2668 = vpop.f32.mrf.mxu0
      %2669 = vmatprep.mubr.bf16.mxu0 %v1673
      %2670 = vmatmul.mubr.bf16.gmra.mxu0 %v1672
      %v2671 = vpop.f32.mrf.mxu0
      %v2672 = vadd.f32 %v2511, %v2671
      %v2673 = vpop.f32.mrf.mxu0
      %v2674 = vpop.f32.mrf.mxu0
      %v2675 = vadd.f32 %v2514, %v2674
      %v2676 = vpop.f32.mrf.mxu0
      %2677 = vmatprep.mubr.bf16.mxu0 %v1681
      %2678 = vmatmul.mubr.bf16.gmra.mxu0 %v1680
      %v2679 = vpop.f32.mrf.mxu0
      %v2680 = vadd.f32 %v2519, %v2679
      %v2681 = vpop.f32.mrf.mxu0
      %v2682 = vpop.f32.mrf.mxu0
      %v2683 = vadd.f32 %v2522, %v2682
      %v2684 = vpop.f32.mrf.mxu0
      %2685 = vdwg.mxu0
      %2686 = vmatprep.subr.bf16.mxu0 0
      %2687 = vmatpush1.bf16.msra.mxu0 %v2130
      %2688 = vmatprep.subr.bf16.mxu0 0
      %2689 = vmatpush1.bf16.msra.mxu0 %v2129
      %2690 = vmatprep.subr.bf16.mxu0 0
      %2691 = vmatpush1.bf16.msra.mxu0 %v2128
      %2692 = vmatprep.subr.bf16.mxu0 0
      %2693 = vmatpush1.bf16.msra.mxu0 %v2127
      %2694 = vmatprep.subr.bf16.mxu0 0
      %2695 = vmatpush1.bf16.msra.mxu0 %v2126
      %2696 = vmatprep.subr.bf16.mxu0 0
      %2697 = vmatpush1.bf16.msra.mxu0 %v2125
      %2698 = vmatprep.subr.bf16.mxu0 0
      %2699 = vmatpush1.bf16.msra.mxu0 %v2124
      %2700 = vmatprep.subr.bf16.mxu0 0
      %2701 = vmatpush1.bf16.msra.mxu0 %v2123
      %2702 = vmatprep.subr.bf16.mxu0 0
      %2703 = vmatpush2.bf16.msra.mxu0 %v2138
      %2704 = vmatprep.subr.bf16.mxu0 0
      %2705 = vmatpush2.bf16.msra.mxu0 %v2137
      %2706 = vmatprep.subr.bf16.mxu0 0
      %2707 = vmatpush2.bf16.msra.mxu0 %v2136
      %2708 = vmatprep.subr.bf16.mxu0 0
      %2709 = vmatpush2.bf16.msra.mxu0 %v2135
      %2710 = vmatprep.subr.bf16.mxu0 0
      %2711 = vmatpush2.bf16.msra.mxu0 %v2134
      %2712 = vmatprep.subr.bf16.mxu0 0
      %2713 = vmatpush2.bf16.msra.mxu0 %v2133
      %2714 = vmatprep.subr.bf16.mxu0 0
      %2715 = vmatpush2.bf16.msra.mxu0 %v2132
      %2716 = vmatprep.subr.bf16.mxu0 0
      %2717 = vmatpush2.bf16.msra.mxu0 %v2131
      %2718 = vmatprep.mubr.bf16.mxu0 %v1563
      %2719 = vmatmul.mubr.bf16.gmra.mxu0 %v1562
      %v2720 = vpop.f32.mrf.mxu0
      %v2721 = vadd.f32 %v2560, %v2720
      %v2722 = vpop.f32.mrf.mxu0
      %v2723 = vpop.f32.mrf.mxu0
      %v2724 = vadd.f32 %v2563, %v2723
      %v2725 = vpop.f32.mrf.mxu0
      %2726 = vmatprep.mubr.bf16.mxu0 %v1571
      %2727 = vmatmul.mubr.bf16.gmra.mxu0 %v1570
      %v2728 = vpop.f32.mrf.mxu0
      %v2729 = vadd.f32 %v2568, %v2728
      %v2730 = vpop.f32.mrf.mxu0
      %v2731 = vpop.f32.mrf.mxu0
      %v2732 = vadd.f32 %v2571, %v2731
      %v2733 = vpop.f32.mrf.mxu0
      %2734 = vmatprep.mubr.bf16.mxu0 %v1579
      %2735 = vmatmul.mubr.bf16.gmra.mxu0 %v1578
      %v2736 = vpop.f32.mrf.mxu0
      %v2737 = vadd.f32 %v2576, %v2736
      %v2738 = vpop.f32.mrf.mxu0
      %v2739 = vpop.f32.mrf.mxu0
      %v2740 = vadd.f32 %v2579, %v2739
      %v2741 = vpop.f32.mrf.mxu0
      %2742 = vmatprep.mubr.bf16.mxu0 %v1587
      %2743 = vmatmul.mubr.bf16.gmra.mxu0 %v1586
      %v2744 = vpop.f32.mrf.mxu0
      %v2745 = vadd.f32 %v2584, %v2744
      %v2746 = vpop.f32.mrf.mxu0
      %v2747 = vpop.f32.mrf.mxu0
      %v2748 = vadd.f32 %v2587, %v2747
      %v2749 = vpop.f32.mrf.mxu0
      %2750 = vmatprep.mubr.bf16.mxu0 %v1595
      %2751 = vmatmul.mubr.bf16.gmra.mxu0 %v1594
      %v2752 = vpop.f32.mrf.mxu0
      %v2753 = vadd.f32 %v2592, %v2752
      %v2754 = vpop.f32.mrf.mxu0
      %v2755 = vpop.f32.mrf.mxu0
      %v2756 = vadd.f32 %v2595, %v2755
      %v2757 = vpop.f32.mrf.mxu0
      %2758 = vmatprep.mubr.bf16.mxu0 %v1603
      %2759 = vmatmul.mubr.bf16.gmra.mxu0 %v1602
      %v2760 = vpop.f32.mrf.mxu0
      %v2761 = vadd.f32 %v2600, %v2760
      %v2762 = vpop.f32.mrf.mxu0
      %v2763 = vpop.f32.mrf.mxu0
      %v2764 = vadd.f32 %v2603, %v2763
      %v2765 = vpop.f32.mrf.mxu0
      %2766 = vmatprep.mubr.bf16.mxu0 %v1611
      %2767 = vmatmul.mubr.bf16.gmra.mxu0 %v1610
      %v2768 = vpop.f32.mrf.mxu0
      %v2769 = vadd.f32 %v2608, %v2768
      %v2770 = vpop.f32.mrf.mxu0
      %v2771 = vpop.f32.mrf.mxu0
      %v2772 = vadd.f32 %v2611, %v2771
      %v2773 = vpop.f32.mrf.mxu0
      %2774 = vmatprep.mubr.bf16.mxu0 %v1619
      %2775 = vmatmul.mubr.bf16.gmra.mxu0 %v1618
      %v2776 = vpop.f32.mrf.mxu0
      %v2777 = vadd.f32 %v2616, %v2776
      %v2778 = vpop.f32.mrf.mxu0
      %v2779 = vpop.f32.mrf.mxu0
      %v2780 = vadd.f32 %v2619, %v2779
      %v2781 = vpop.f32.mrf.mxu0
      %2782 = vmatprep.mubr.bf16.mxu0 %v1627
      %2783 = vmatmul.mubr.bf16.gmra.mxu0 %v1626
      %v2784 = vpop.f32.mrf.mxu0
      %v2785 = vadd.f32 %v2624, %v2784
      %v2786 = vpop.f32.mrf.mxu0
      %v2787 = vpop.f32.mrf.mxu0
      %v2788 = vadd.f32 %v2627, %v2787
      %v2789 = vpop.f32.mrf.mxu0
      %2790 = vmatprep.mubr.bf16.mxu0 %v1635
      %2791 = vmatmul.mubr.bf16.gmra.mxu0 %v1634
      %v2792 = vpop.f32.mrf.mxu0
      %v2793 = vadd.f32 %v2632, %v2792
      %v2794 = vpop.f32.mrf.mxu0
      %v2795 = vpop.f32.mrf.mxu0
      %v2796 = vadd.f32 %v2635, %v2795
      %v2797 = vpop.f32.mrf.mxu0
      %2798 = vmatprep.mubr.bf16.mxu0 %v1643
      %2799 = vmatmul.mubr.bf16.gmra.mxu0 %v1642
      %v2800 = vpop.f32.mrf.mxu0
      %v2801 = vadd.f32 %v2640, %v2800
      %v2802 = vpop.f32.mrf.mxu0
      %v2803 = vpop.f32.mrf.mxu0
      %v2804 = vadd.f32 %v2643, %v2803
      %v2805 = vpop.f32.mrf.mxu0
      %2806 = vmatprep.mubr.bf16.mxu0 %v1651
      %2807 = vmatmul.mubr.bf16.gmra.mxu0 %v1650
      %v2808 = vpop.f32.mrf.mxu0
      %v2809 = vadd.f32 %v2648, %v2808
      %v2810 = vpop.f32.mrf.mxu0
      %v2811 = vpop.f32.mrf.mxu0
      %v2812 = vadd.f32 %v2651, %v2811
      %v2813 = vpop.f32.mrf.mxu0
      %2814 = vmatprep.mubr.bf16.mxu0 %v1659
      %2815 = vmatmul.mubr.bf16.gmra.mxu0 %v1658
      %v2816 = vpop.f32.mrf.mxu0
      %v2817 = vadd.f32 %v2656, %v2816
      %v2818 = vpop.f32.mrf.mxu0
      %v2819 = vpop.f32.mrf.mxu0
      %v2820 = vadd.f32 %v2659, %v2819
      %v2821 = vpop.f32.mrf.mxu0
      %2822 = vmatprep.mubr.bf16.mxu0 %v1667
      %2823 = vmatmul.mubr.bf16.gmra.mxu0 %v1666
      %v2824 = vpop.f32.mrf.mxu0
      %v2825 = vadd.f32 %v2664, %v2824
      %v2826 = vpop.f32.mrf.mxu0
      %v2827 = vpop.f32.mrf.mxu0
      %v2828 = vadd.f32 %v2667, %v2827
      %v2829 = vpop.f32.mrf.mxu0
      %2830 = vmatprep.mubr.bf16.mxu0 %v1675
      %2831 = vmatmul.mubr.bf16.gmra.mxu0 %v1674
      %v2832 = vpop.f32.mrf.mxu0
      %v2833 = vadd.f32 %v2672, %v2832
      %v2834 = vpop.f32.mrf.mxu0
      %v2835 = vpop.f32.mrf.mxu0
      %v2836 = vadd.f32 %v2675, %v2835
      %v2837 = vpop.f32.mrf.mxu0
      %2838 = vmatprep.mubr.bf16.mxu0 %v1683
      %2839 = vmatmul.mubr.bf16.gmra.mxu0 %v1682
      %v2840 = vpop.f32.mrf.mxu0
      %v2841 = vadd.f32 %v2680, %v2840
      %v2842 = vpop.f32.mrf.mxu0
      %v2843 = vpop.f32.mrf.mxu0
      %v2844 = vadd.f32 %v2683, %v2843
      %v2845 = vpop.f32.mrf.mxu0
      %2846 = vdwg.mxu0
      %2847 = vst.msk [vmem:[%s226] sm:$0xff] %vm479, %v2721
      %2848 = vst.msk [vmem:[%s226 + $0x8] sm:$0xff] %vm479, %v2724
      %2849 = vst.msk [vmem:[%s226 + $0x10] sm:$0xff] %vm479, %v2729
      %2850 = vst.msk [vmem:[%s226 + $0x18] sm:$0xff] %vm479, %v2732
      %2851 = vst.msk [vmem:[%s226 + $0x20] sm:$0xff] %vm479, %v2737
      %2852 = vst.msk [vmem:[%s226 + $0x28] sm:$0xff] %vm479, %v2740
      %2853 = vst.msk [vmem:[%s226 + $0x30] sm:$0xff] %vm479, %v2745
      %2854 = vst.msk [vmem:[%s226 + $0x38] sm:$0xff] %vm479, %v2748
      %2855 = vst.msk [vmem:[%s226 + $0x40] sm:$0xff] %vm479, %v2753
      %2856 = vst.msk [vmem:[%s226 + $0x48] sm:$0xff] %vm479, %v2756
      %2857 = vst.msk [vmem:[%s226 + $0x50] sm:$0xff] %vm479, %v2761
      %2858 = vst.msk [vmem:[%s226 + $0x58] sm:$0xff] %vm479, %v2764
      %2859 = vst.msk [vmem:[%s226 + $0x60] sm:$0xff] %vm479, %v2769
      %2860 = vst.msk [vmem:[%s226 + $0x68] sm:$0xff] %vm479, %v2772
      %2861 = vst.msk [vmem:[%s226 + $0x70] sm:$0xff] %vm479, %v2777
      %2862 = vst.msk [vmem:[%s226 + $0x78] sm:$0xff] %vm479, %v2780
      %2863 = vst.msk [vmem:[%s226 + $0x80] sm:$0xff] %vm479, %v2785
      %2864 = vst.msk [vmem:[%s226 + $0x88] sm:$0xff] %vm479, %v2788
      %2865 = vst.msk [vmem:[%s226 + $0x90] sm:$0xff] %vm479, %v2793
      %2866 = vst.msk [vmem:[%s226 + $0x98] sm:$0xff] %vm479, %v2796
      %2867 = vst.msk [vmem:[%s226 + $0xa0] sm:$0xff] %vm479, %v2801
      %2868 = vst.msk [vmem:[%s226 + $0xa8] sm:$0xff] %vm479, %v2804
      %2869 = vst.msk [vmem:[%s226 + $0xb0] sm:$0xff] %vm479, %v2809
      %2870 = vst.msk [vmem:[%s226 + $0xb8] sm:$0xff] %vm479, %v2812
      %2871 = vst.msk [vmem:[%s226 + $0xc0] sm:$0xff] %vm479, %v2817
      %2872 = vst.msk [vmem:[%s226 + $0xc8] sm:$0xff] %vm479, %v2820
      %2873 = vst.msk [vmem:[%s226 + $0xd0] sm:$0xff] %vm479, %v2825
      %2874 = vst.msk [vmem:[%s226 + $0xd8] sm:$0xff] %vm479, %v2828
      %2875 = vst.msk [vmem:[%s226 + $0xe0] sm:$0xff] %vm479, %v2833
      %2876 = vst.msk [vmem:[%s226 + $0xe8] sm:$0xff] %vm479, %v2836
      %2877 = vst.msk [vmem:[%s226 + $0xf0] sm:$0xff] %vm479, %v2841
      %2878 = vst.msk [vmem:[%s226 + $0xf8] sm:$0xff] %vm479, %v2844
      %s2879 = smul.u32 32, %s16
      %p2880 = scmp.lt.s32.totalorder %s2879, 63
      %s2881 = scalar_select %p2880, %s2879, 63
      %s2882 = smul.addr %s2881, 8
      %s2883 = scalar_lea.vmem %s5, %s2882
      // Predicated region
      $region41: #{tpu_custom_call.1} parent=39 // pred_check
        %p2884 = pneg %p144
      $region42: #{tpu_custom_call.1} parent=39 // pred_check_branch
        %2886 = sbr.rel (%p2884) target = $region44
      $region43: #{tpu_custom_call.1} parent=39 // pred_region
        %s2887 = smul.u32 32, %s16
      $region44: #{tpu_custom_call.1} parent=39 // pred_fallthru
        _
    $region40: #{tpu_custom_call.1} parent=5 // pred_fallthru
      _
    %p2888 = scmp.le.s32.totalorder 2, %s11
    // Predicated region
    $region45: #{tpu_custom_call.1} parent=5 // pred_check
      %p2889 = pneg %p2888
    $region46: #{tpu_custom_call.1} parent=5 // pred_check_branch
      %2891 = sbr.rel (%p2889) target = $region48
    $region47: #{tpu_custom_call.1} parent=5 // pred_region
      %s2892 = ssub.s32 %s11, 2
      // Predicated region
      $region49: #{tpu_custom_call.1} parent=47 // pred_check
        %p2893 = pneg %p150
      $region50: #{tpu_custom_call.1} parent=47 // pred_check_branch
        %2895 = sbr.rel (%p2893) target = $region52
      $region51: #{tpu_custom_call.1} parent=47 // pred_region
        %s2896 = smul.u32 32, %s17
        %p2897 = scmp.lt.s32.totalorder %s2896, 63
        %s2898 = scalar_select %p2897, %s2896, 63
        %s2899 = smul.addr %s2898, 8
        %s2900 = scalar_lea.vmem %s5, %s2899
      $region52: #{tpu_custom_call.1} parent=47 // pred_fallthru
        _
    $region48: #{tpu_custom_call.1} parent=5 // pred_fallthru
      _
  $region6: #{tpu_custom_call.1} parent=0 // loop_footer
    %s15 = sadd.s32 1, %s11
  $region7: #{tpu_custom_call.1} parent=0 // loop_footer_branch
    %10 = sbr.rel target = $region3
  $region8: #{tpu_custom_call.1} parent=0 // loop_exit
    _

</llo_original>
